<compile_context>
chip_gen: v5e
topology: v5e:2x2
jax: 0.10.0
libtpu: 0.0.40
codegen_flags: <defaults>
</compile_context>

<pallas_src>
import functools

import jax
import jax.numpy as jnp
from jax.experimental import pallas as pl
from jax.experimental.pallas import tpu as pltpu

# Small, deterministic hyperparameters consistent with the module's forward.
VOCAB = 64            # stands in for len(config.w2s)
PAD_IDX = 0           # stands in for config.w2s.PAD
EMB_DIM = 300         # embedding_dim=300 (as in the module)
TEXT_MAX_LEN = 8      # stands in for config.TEXT_MAX_LEN
NUM_CLASSES = 2

V_PAD = 128           # vocab padded to one lane tile (gather matmul K aligned)
E_PAD = 384           # 300 -> next multiple of 128
C_PAD = 128           # class dim padded to one lane tile for dense stores
BATCH = 2
BATCH_TILE = 8        # >=128 recommended for real batches; 8 for this unit test


def imdb_kernel(ids_ref, emb_ref, w_ref, b_ref, out_ref):
    bt, t_len = ids_ref.shape
    v_pad, e_pad = emb_ref.shape

    # --- Fused embedding gather: one-hot @ table (single MXU matmul, K = V_PAD) ---
    ids = ids_ref[...]                                              # (bt, T) int32
    iota_v = jax.lax.broadcasted_iota(jnp.int32, (bt, t_len, v_pad), 2)
    onehot = (iota_v == ids[:, :, None]).astype(jnp.float32)        # (bt, T, V_PAD)
    onehot = onehot.reshape(bt * t_len, v_pad)                      # layout-preserving collapse
    emb = jnp.dot(onehot, emb_ref[...],
                  preferred_element_type=jnp.float32)               # (bt*T, E_PAD)

    # --- Flatten and single big FC matmul (K = T*E_PAD, lane aligned) ---
    flat = emb.reshape(bt, t_len * e_pad)                           # (bt, T*E_PAD)
    logits = jnp.dot(flat, w_ref[...],
                     preferred_element_type=jnp.float32) + b_ref[...]  # (bt, C_PAD)

    # --- log_softmax over the 2 real classes (lanes 0 and 1 only) ---
    c0 = logits[:, 0:1]
    c1 = logits[:, 1:2]
    m = jnp.maximum(c0, c1)
    lse = m + jnp.log(jnp.exp(c0 - m) + jnp.exp(c1 - m))
    # Padding lanes hold garbage; the wrapper slices [:, :NUM_CLASSES].
    out_ref[...] = logits - lse


@functools.partial(jax.jit, static_argnames=("batch_tile",))
def imdb_forward(ids, emb_table, w, b, *, batch_tile=BATCH_TILE):
    bsz, t_len = ids.shape
    v_pad, e_pad = emb_table.shape
    c_pad = w.shape[1]

    n_blocks = -(-bsz // batch_tile)
    b_padded = n_blocks * batch_tile
    if b_padded != bsz:
        # Padded rows use PAD tokens -> zero embedding; they are sliced off below.
        ids = jnp.pad(ids, ((0, b_padded - bsz), (0, 0)), constant_values=PAD_IDX)

    out = pl.pallas_call(
        imdb_kernel,
        out_shape=jax.ShapeDtypeStruct((b_padded, c_pad), jnp.float32),
        grid_spec=pltpu.PrefetchScalarGridSpec(
            num_scalar_prefetch=0,
            grid=(n_blocks,),
            in_specs=[
                pl.BlockSpec((batch_tile, t_len), lambda i: (i, 0)),     # ids (tiled over batch)
                pl.BlockSpec((v_pad, e_pad), lambda i: (0, 0)),          # emb table (resident)
                pl.BlockSpec((t_len * e_pad, c_pad), lambda i: (0, 0)),  # fc weight (resident)
                pl.BlockSpec((1, c_pad), lambda i: (0, 0)),              # fc bias (resident)
            ],
            out_specs=pl.BlockSpec((batch_tile, c_pad), lambda i: (i, 0)),
        ),
        compiler_params=pltpu.CompilerParams(
            dimension_semantics=("parallel",)),
    )(ids, emb_table, w, b)
    return out[:bsz, :NUM_CLASSES]


def make_params(key):
    k_emb, k_w, k_b = jax.random.split(key, 3)

    # nn.Embedding default init ~ N(0, 1); padding_idx row zeroed.
    emb_raw = jax.random.normal(k_emb, (VOCAB, EMB_DIM), jnp.float32)
    emb_raw = emb_raw.at[PAD_IDX].set(0.0)

    fan_in = TEXT_MAX_LEN * EMB_DIM
    bound = float(fan_in) ** -0.5
    # nn.Linear: weight (out=2, in=T*300), bias (2,), default uniform(-1/sqrt(fan_in), ...)
    fc_w = jax.random.uniform(k_w, (NUM_CLASSES, fan_in), jnp.float32, -bound, bound)
    fc_b = jax.random.uniform(k_b, (NUM_CLASSES,), jnp.float32, -bound, bound)

    # Kernel-side packed params.
    # Embedding table padded to (V_PAD, E_PAD) with zeros.
    emb_table = jnp.pad(emb_raw, ((0, V_PAD - VOCAB), (0, E_PAD - EMB_DIM)))

    # fc weight repacked so w[t*E_PAD + e, c] == fc_w[c, t*300 + e] (zeros in padding).
    w3 = jnp.transpose(fc_w, (1, 0)).reshape(TEXT_MAX_LEN, EMB_DIM, NUM_CLASSES)
    w3 = jnp.pad(w3, ((0, 0), (0, E_PAD - EMB_DIM), (0, C_PAD - NUM_CLASSES)))
    w = w3.reshape(TEXT_MAX_LEN * E_PAD, C_PAD)
    b = jnp.pad(fc_b, (0, C_PAD - NUM_CLASSES)).reshape(1, C_PAD)
    return emb_raw, fc_w, fc_b, emb_table, w, b


def reference_forward(ids, emb_raw, fc_w, fc_b):
    # Pure-JAX reference of the PyTorch forward (for correctness check).
    emb = jnp.take(emb_raw, ids, axis=0)                # (B, T, E)
    flat = emb.reshape(emb.shape[0], -1)                # (B, T*E)
    logits = flat @ fc_w.T + fc_b                       # (B, 2)
    return jax.nn.log_softmax(logits, axis=-1)


if __name__ == "__main__":
    key = jax.random.PRNGKey(0)
    k_params, k_ids = jax.random.split(key)

    emb_raw, fc_w, fc_b, emb_table, w, b = make_params(k_params)
    # Assumption (matches nn.Embedding contract): 0 <= ids < VOCAB.
    ids = jax.random.randint(k_ids, (BATCH, TEXT_MAX_LEN), 0, VOCAB, dtype=jnp.int32)

    out = imdb_forward(ids, emb_table, w, b, batch_tile=BATCH_TILE)
    out = jax.block_until_ready(out)

    ref = reference_forward(ids, emb_raw, fc_w, fc_b)
    assert out.shape == (BATCH, NUM_CLASSES)
    assert jnp.allclose(out, ref, atol=1e-4, rtol=1e-4), (out, ref)
    print("KERNEL_OK")
</pallas_src>

<mosaic_0001>
module attributes {stable_mosaic.version = 11 : i64} {
  func.func @imdb_kernel(%arg0: i32, %arg1: memref<8x8xi32, #tpu.memory_space<vmem>>, %arg2: memref<128x384xf32, #tpu.memory_space<vmem>>, %arg3: memref<3072x128xf32, #tpu.memory_space<vmem>>, %arg4: memref<1x128xf32, #tpu.memory_space<vmem>>, %arg5: memref<8x128xf32, #tpu.memory_space<vmem>>) attributes {dimension_semantics = [#tpu.dimension_semantics<parallel>], iteration_bounds = array<i64: 1>, scalar_prefetch = 0 : i64, scratch_operands = 0 : i64, tpu.core_type = #tpu.core_type<tc>, window_params = [{transform_indices = @transform_0, window_bounds = array<i64: 8, 8>}, {pipeline_mode = #tpu.pipeline_mode<synchronous>, transform_indices = @transform_1, window_bounds = array<i64: 128, 384>}, {pipeline_mode = #tpu.pipeline_mode<synchronous>, transform_indices = @transform_2, window_bounds = array<i64: 3072, 128>}, {pipeline_mode = #tpu.pipeline_mode<synchronous>, transform_indices = @transform_3, window_bounds = array<i64: 1, 128>}, {transform_indices = @transform_4, window_bounds = array<i64: 8, 128>}]} {
    %c0 = arith.constant 0 : index
    %c0_0 = arith.constant 0 : index
    %0 = vector.load %arg1[%c0, %c0_0] : memref<8x8xi32, #tpu.memory_space<vmem>>, vector<8x8xi32>
    %1 = tpu.iota {dimensions = array<i32: 2>} : vector<8x8x128xi32>
    %2 = vector.shape_cast %0 : vector<8x8xi32> to vector<8x8x1xi32>
    %3 = vector.broadcast %2 : vector<8x8x1xi32> to vector<8x8x128xi32>
    %4 = arith.cmpi eq, %1, %3 : vector<8x8x128xi32>
    %5 = arith.extui %4 : vector<8x8x128xi1> to vector<8x8x128xi32>
    %6 = arith.sitofp %5 : vector<8x8x128xi32> to vector<8x8x128xf32>
    %7 = vector.shape_cast %6 : vector<8x8x128xf32> to vector<64x128xf32>
    %c0_1 = arith.constant 0 : index
    %c0_2 = arith.constant 0 : index
    %8 = vector.load %arg2[%c0_1, %c0_2] : memref<128x384xf32, #tpu.memory_space<vmem>>, vector<128x384xf32>
    %cst = arith.constant dense<0.000000e+00> : vector<64x384xf32>
    %9 = tpu.matmul %7, %8, %cst {dimension_numbers = #tpu.dot_dimension_numbers<[1], [0], [0], [1], [0, 0, 1, 1], [], []>} : vector<64x128xf32>, vector<128x384xf32>, vector<64x384xf32> -> vector<64x384xf32>
    %10 = vector.shape_cast %9 : vector<64x384xf32> to vector<8x3072xf32>
    %c0_3 = arith.constant 0 : index
    %c0_4 = arith.constant 0 : index
    %11 = vector.load %arg3[%c0_3, %c0_4] : memref<3072x128xf32, #tpu.memory_space<vmem>>, vector<3072x128xf32>
    %cst_5 = arith.constant dense<0.000000e+00> : vector<8x128xf32>
    %12 = tpu.matmul %10, %11, %cst_5 {dimension_numbers = #tpu.dot_dimension_numbers<[1], [0], [0], [1], [0, 0, 1, 1], [], []>} : vector<8x3072xf32>, vector<3072x128xf32>, vector<8x128xf32> -> vector<8x128xf32>
    %c0_6 = arith.constant 0 : index
    %c0_7 = arith.constant 0 : index
    %13 = vector.load %arg4[%c0_6, %c0_7] : memref<1x128xf32, #tpu.memory_space<vmem>>, vector<1x128xf32>
    %14 = vector.broadcast %13 : vector<1x128xf32> to vector<8x128xf32>
    %15 = arith.addf %12, %14 : vector<8x128xf32>
    %16 = vector.extract_strided_slice %15 {offsets = [0, 0], sizes = [8, 1], strides = [1, 1]} : vector<8x128xf32> to vector<8x1xf32>
    %17 = vector.extract_strided_slice %15 {offsets = [0, 1], sizes = [8, 1], strides = [1, 1]} : vector<8x128xf32> to vector<8x1xf32>
    %18 = arith.maximumf %16, %17 : vector<8x1xf32>
    %19 = arith.subf %16, %18 : vector<8x1xf32>
    %20 = math.exp %19 : vector<8x1xf32>
    %21 = arith.subf %17, %18 : vector<8x1xf32>
    %22 = math.exp %21 : vector<8x1xf32>
    %23 = arith.addf %20, %22 : vector<8x1xf32>
    %24 = math.log %23 : vector<8x1xf32>
    %25 = arith.addf %18, %24 : vector<8x1xf32>
    %26 = vector.broadcast %25 : vector<8x1xf32> to vector<8x128xf32>
    %27 = arith.subf %15, %26 : vector<8x128xf32>
    %c0_8 = arith.constant 0 : index
    %c0_9 = arith.constant 0 : index
    %28 = vector.load %arg5[%c0_8, %c0_9] : memref<8x128xf32, #tpu.memory_space<vmem>>, vector<8x128xf32>
    tpu.vector_store %arg5[%c0_8, %c0_9], %27 {strides = array<i32>} : memref<8x128xf32, #tpu.memory_space<vmem>>, vector<8x128xf32>,
    return
  }
  func.func @transform_0(%arg0: i32) -> (i32, i32) {
    %c0_i32 = arith.constant 0 : i32
    %c0_i32_0 = arith.constant 0 : i32
    return %arg0, %c0_i32 : i32, i32
  }
  func.func @transform_1(%arg0: i32) -> (i32, i32) {
    %c0_i32 = arith.constant 0 : i32
    %c0_i32_0 = arith.constant 0 : i32
    %c0_i32_1 = arith.constant 0 : i32
    return %c0_i32, %c0_i32_0 : i32, i32
  }
  func.func @transform_2(%arg0: i32) -> (i32, i32) {
    %c0_i32 = arith.constant 0 : i32
    %c0_i32_0 = arith.constant 0 : i32
    %c0_i32_1 = arith.constant 0 : i32
    return %c0_i32, %c0_i32_0 : i32, i32
  }
  func.func @transform_3(%arg0: i32) -> (i32, i32) {
    %c0_i32 = arith.constant 0 : i32
    %c0_i32_0 = arith.constant 0 : i32
    %c0_i32_1 = arith.constant 0 : i32
    return %c0_i32, %c0_i32_0 : i32, i32
  }
  func.func @transform_4(%arg0: i32) -> (i32, i32) {
    %c0_i32 = arith.constant 0 : i32
    %c0_i32_0 = arith.constant 0 : i32
    return %arg0, %c0_i32 : i32, i32
  }
}

</mosaic_0001>

<llo_original>
// kernel: imdb_forward.1
$region0: #{imdb_forward.1}
  #allocation0 [shape = 'u32[]', space=smem, size = 0x4, offset = 0x4, fixed_abs, tag = 'smem constant byte address 0x4 - core index']
  #allocation1 [shape = 'u32[72,128]{1,0:T(1,128)}', space=vmem, size = 0x9000, scoped, tag = 'internal scratch']
  %s0 = inlined_call_operand.vmem [shape: s32[8,8], index: 0, kind: input, shape index: {}]
  %s1 = inlined_call_operand.hbm [shape: f32[128,384], index: 1, kind: input, shape index: {}]
  %s2 = inlined_call_operand.hbm [shape: f32[3072,128], index: 2, kind: input, shape index: {}]
  %s3 = inlined_call_operand.hbm [shape: f32[1,128], index: 3, kind: input, shape index: {}]
  %s4 = inlined_call_operand.vmem [shape: f32[8,128], index: 4, kind: output, shape index: {}]
  %s5 = sld [smem:[#allocation0]]
  $region38: #{imdb_forward.1} parent=0
    _
  %s7 = ssub.s32 1, %s5
  %s8 = scalar_select 0, %s7, %s5
  $region1: #{imdb_forward.1} parent=0
    #allocation2 [shape = 'u8[196608]{0}', space=vmem, size = 0x30000, scoped, tag = 'input window, operand 1, single buffered']
    #allocation3 [shape = 's32[1]{0}', space=sflag, size = 0x4, scoped, tag = 'scoped memory for imdb_forward.1']
    #allocation4 [shape = 'u8[1572864]{0}', space=vmem, size = 0x180000, scoped, tag = 'input window, operand 2, single buffered']
    #allocation5 [shape = 's32[1]{0}', space=sflag, size = 0x4, scoped, tag = 'scoped memory for imdb_forward.1']
    #allocation6 [shape = 'u8[512]{0}', space=vmem, size = 0x400, scoped, tag = 'input window, operand 3, single buffered']
    %9 = vsyncpa [#allocation3], 0
    %10 = vsyncpa [#allocation5], 0
    // Predicated region
    $region2: #{imdb_forward.1} parent=1 // pred_check
      _
    $region3: #{imdb_forward.1} parent=1 // pred_check_branch
      %12 = sbr.rel (0) target = $region5
    $region4: #{imdb_forward.1} parent=1 // pred_region
      _
    $region5: #{imdb_forward.1} parent=1 // pred_fallthru
      _
    // Predicated region
    $region6: #{imdb_forward.1} parent=1 // pred_check
      _
    $region7: #{imdb_forward.1} parent=1 // pred_check_branch
      %14 = sbr.rel (0) target = $region9
    $region8: #{imdb_forward.1} parent=1 // pred_region
      %16 = vsyncadd [#allocation3], 0
      %s17 = sshll.u32 %s1, 4
      %s18 = int_to_ptr.hbm [resolvable:$true] %s17
      %s19 = sshll.u32 [#allocation2], 4
      %s20 = int_to_ptr.vmem [resolvable:$true] %s19
      %25 = dma.hbm_to_vmem [thread:$0]  %s18, 6144, %s20, [#allocation3], 384, 384, 24
    $region9: #{imdb_forward.1} parent=1 // pred_fallthru
      _
    // Predicated region
    $region10: #{imdb_forward.1} parent=1 // pred_check
      _
    $region11: #{imdb_forward.1} parent=1 // pred_check_branch
      %27 = sbr.rel (0) target = $region13
    $region12: #{imdb_forward.1} parent=1 // pred_region
      %29 = vsyncadd [#allocation5], 0
      %s30 = sshll.u32 %s2, 4
      %s31 = int_to_ptr.hbm [resolvable:$true] %s30
      %s32 = sshll.u32 [#allocation4], 4
      %s33 = int_to_ptr.vmem [resolvable:$true] %s32
      %38 = dma.hbm_to_vmem [thread:$0]  %s31, 49152, %s33, [#allocation5], 128, 128, 8
    $region13: #{imdb_forward.1} parent=1 // pred_fallthru
      _
    // Predicated region
    $region14: #{imdb_forward.1} parent=1 // pred_check
      _
    $region15: #{imdb_forward.1} parent=1 // pred_check_branch
      %40 = sbr.rel (0) target = $region17
    $region16: #{imdb_forward.1} parent=1 // pred_region
      %42 = vsyncadd [#allocation5], 0
      %s44 = sshll.u32 %s3, 4
      %s45 = int_to_ptr.hbm [resolvable:$true] %s44
      %s46 = sshll.u32 [#allocation6], 4
      %s47 = int_to_ptr.vmem [resolvable:$true] %s46
      %49 = dma.hbm_to_vmem [thread:$0]  %s45, 16, %s47, [#allocation5]
    $region17: #{imdb_forward.1} parent=1 // pred_fallthru
      _
    // Predicated region
    $region18: #{imdb_forward.1} parent=1 // pred_check
      _
    $region19: #{imdb_forward.1} parent=1 // pred_check_branch
      %51 = sbr.rel (0) target = $region21
    $region20: #{imdb_forward.1} parent=1 // pred_region
      %53 = dma.done [#allocation3], 6144
    $region21: #{imdb_forward.1} parent=1 // pred_fallthru
      _
    // Predicated region
    $region22: #{imdb_forward.1} parent=1 // pred_check
      _
    $region23: #{imdb_forward.1} parent=1 // pred_check_branch
      %55 = sbr.rel (0) target = $region25
    $region24: #{imdb_forward.1} parent=1 // pred_region
      %57 = dma.done [#allocation5], 49152
    $region25: #{imdb_forward.1} parent=1 // pred_fallthru
      _
    // Predicated region
    $region26: #{imdb_forward.1} parent=1 // pred_check
      _
    $region27: #{imdb_forward.1} parent=1 // pred_check_branch
      %59 = sbr.rel (0) target = $region29
    $region28: #{imdb_forward.1} parent=1 // pred_region
      %61 = dma.done [#allocation5], 16
    $region29: #{imdb_forward.1} parent=1 // pred_fallthru
      _
    %v62 = vld [vmem:[%s0] sm:$0xff]
    %v63 = vlaneseq
    %v64 = vand.u32 %v63, 127
    %v65 = vperm.slane %v62, 0
    %v66 = vlaneseq
    %v67 = vshrl.u32 %v66, 7
    %69 = vset.pattern.permute.xlu0 %v67
    %70 = vperm.xlu0 %69, %v65
    %v71 = vpop.permute.xlu0 %70
    %v72 = vperm.slane %v62, 1
    %v73 = vlaneseq
    %v74 = vshrl.u32 %v73, 7
    %76 = vset.pattern.permute.xlu0 %v74
    %77 = vperm.xlu0 %76, %v72
    %v78 = vpop.permute.xlu0 %77
    %v79 = vperm.slane %v62, 2
    %v80 = vlaneseq
    %v81 = vshrl.u32 %v80, 7
    %83 = vset.pattern.permute.xlu0 %v81
    %84 = vperm.xlu0 %83, %v79
    %v85 = vpop.permute.xlu0 %84
    %v86 = vperm.slane %v62, 3
    %v87 = vlaneseq
    %v88 = vshrl.u32 %v87, 7
    %90 = vset.pattern.permute.xlu0 %v88
    %91 = vperm.xlu0 %90, %v86
    %v92 = vpop.permute.xlu0 %91
    %v93 = vperm.slane %v62, 4
    %v94 = vlaneseq
    %v95 = vshrl.u32 %v94, 7
    %97 = vset.pattern.permute.xlu0 %v95
    %98 = vperm.xlu0 %97, %v93
    %v99 = vpop.permute.xlu0 %98
    %v100 = vperm.slane %v62, 5
    %v101 = vlaneseq
    %v102 = vshrl.u32 %v101, 7
    %104 = vset.pattern.permute.xlu0 %v102
    %105 = vperm.xlu0 %104, %v100
    %v106 = vpop.permute.xlu0 %105
    %v107 = vperm.slane %v62, 6
    %v108 = vlaneseq
    %v109 = vshrl.u32 %v108, 7
    %111 = vset.pattern.permute.xlu0 %v109
    %112 = vperm.xlu0 %111, %v107
    %v113 = vpop.permute.xlu0 %112
    %v114 = vperm.slane %v62, 7
    %v115 = vlaneseq
    %v116 = vshrl.u32 %v115, 7
    %118 = vset.pattern.permute.xlu0 %v116
    %119 = vperm.xlu0 %118, %v114
    %v120 = vpop.permute.xlu0 %119
    %vm121 = vcmp.eq.s32.totalorder %v64, %v71
    %vm122 = vcmp.eq.s32.totalorder %v64, %v78
    %vm123 = vcmp.eq.s32.totalorder %v64, %v85
    %vm124 = vcmp.eq.s32.totalorder %v64, %v92
    %vm125 = vcmp.eq.s32.totalorder %v64, %v99
    %vm126 = vcmp.eq.s32.totalorder %v64, %v106
    %vm127 = vcmp.eq.s32.totalorder %v64, %v113
    %vm128 = vcmp.eq.s32.totalorder %v64, %v120
    %v129 = vsel %vm121, 1, 0
    %v130 = vsel %vm122, 1, 0
    %v131 = vsel %vm123, 1, 0
    %v132 = vsel %vm124, 1, 0
    %v133 = vsel %vm125, 1, 0
    %v134 = vsel %vm126, 1, 0
    %v135 = vsel %vm127, 1, 0
    %v136 = vsel %vm128, 1, 0
    %v137 = vcvt.s32.f32 %v129
    %v138 = vcvt.s32.f32 %v130
    %v139 = vcvt.s32.f32 %v131
    %v140 = vcvt.s32.f32 %v132
    %v141 = vcvt.s32.f32 %v133
    %v142 = vcvt.s32.f32 %v134
    %v143 = vcvt.s32.f32 %v135
    %v144 = vcvt.s32.f32 %v136
    %v145 = vld [vmem:[#allocation2] sm:$0xff]
    %v146 = vld [vmem:[#allocation2 + $0x8] sm:$0xff]
    %v147 = vld [vmem:[#allocation2 + $0x10] sm:$0xff]
    %v148 = vld [vmem:[#allocation2 + $0x18] sm:$0xff]
    %v149 = vld [vmem:[#allocation2 + $0x20] sm:$0xff]
    %v150 = vld [vmem:[#allocation2 + $0x28] sm:$0xff]
    %v151 = vld [vmem:[#allocation2 + $0x30] sm:$0xff]
    %v152 = vld [vmem:[#allocation2 + $0x38] sm:$0xff]
    %v153 = vld [vmem:[#allocation2 + $0x40] sm:$0xff]
    %v154 = vld [vmem:[#allocation2 + $0x48] sm:$0xff]
    %v155 = vld [vmem:[#allocation2 + $0x50] sm:$0xff]
    %v156 = vld [vmem:[#allocation2 + $0x58] sm:$0xff]
    %v157 = vld [vmem:[#allocation2 + $0x60] sm:$0xff]
    %v158 = vld [vmem:[#allocation2 + $0x68] sm:$0xff]
    %v159 = vld [vmem:[#allocation2 + $0x70] sm:$0xff]
    %v160 = vld [vmem:[#allocation2 + $0x78] sm:$0xff]
    %v161 = vld [vmem:[#allocation2 + $0x80] sm:$0xff]
    %v162 = vld [vmem:[#allocation2 + $0x88] sm:$0xff]
    %v163 = vld [vmem:[#allocation2 + $0x90] sm:$0xff]
    %v164 = vld [vmem:[#allocation2 + $0x98] sm:$0xff]
    %v165 = vld [vmem:[#allocation2 + $0xa0] sm:$0xff]
    %v166 = vld [vmem:[#allocation2 + $0xa8] sm:$0xff]
    %v167 = vld [vmem:[#allocation2 + $0xb0] sm:$0xff]
    %v168 = vld [vmem:[#allocation2 + $0xb8] sm:$0xff]
    %v169 = vld [vmem:[#allocation2 + $0xc0] sm:$0xff]
    %v170 = vld [vmem:[#allocation2 + $0xc8] sm:$0xff]
    %v171 = vld [vmem:[#allocation2 + $0xd0] sm:$0xff]
    %v172 = vld [vmem:[#allocation2 + $0xd8] sm:$0xff]
    %v173 = vld [vmem:[#allocation2 + $0xe0] sm:$0xff]
    %v174 = vld [vmem:[#allocation2 + $0xe8] sm:$0xff]
    %v175 = vld [vmem:[#allocation2 + $0xf0] sm:$0xff]
    %v176 = vld [vmem:[#allocation2 + $0xf8] sm:$0xff]
    %v177 = vld [vmem:[#allocation2 + $0x100] sm:$0xff]
    %v178 = vld [vmem:[#allocation2 + $0x108] sm:$0xff]
    %v179 = vld [vmem:[#allocation2 + $0x110] sm:$0xff]
    %v180 = vld [vmem:[#allocation2 + $0x118] sm:$0xff]
    %v181 = vld [vmem:[#allocation2 + $0x120] sm:$0xff]
    %v182 = vld [vmem:[#allocation2 + $0x128] sm:$0xff]
    %v183 = vld [vmem:[#allocation2 + $0x130] sm:$0xff]
    %v184 = vld [vmem:[#allocation2 + $0x138] sm:$0xff]
    %v185 = vld [vmem:[#allocation2 + $0x140] sm:$0xff]
    %v186 = vld [vmem:[#allocation2 + $0x148] sm:$0xff]
    %v187 = vld [vmem:[#allocation2 + $0x150] sm:$0xff]
    %v188 = vld [vmem:[#allocation2 + $0x158] sm:$0xff]
    %v189 = vld [vmem:[#allocation2 + $0x160] sm:$0xff]
    %v190 = vld [vmem:[#allocation2 + $0x168] sm:$0xff]
    %v191 = vld [vmem:[#allocation2 + $0x170] sm:$0xff]
    %v192 = vld [vmem:[#allocation2 + $0x178] sm:$0xff]
    %193 = vmatpush.msra.mxu0 %v190
    %194 = vmatpush.msra.mxu0 %v187
    %195 = vmatpush.msra.mxu0 %v184
    %196 = vmatpush.msra.mxu0 %v181
    %197 = vmatpush.msra.mxu0 %v178
    %198 = vmatpush.msra.mxu0 %v175
    %199 = vmatpush.msra.mxu0 %v172
    %200 = vmatpush.msra.mxu0 %v169
    %201 = vmatpush.msra.mxu0 %v166
    %202 = vmatpush.msra.mxu0 %v163
    %203 = vmatpush.msra.mxu0 %v160
    %204 = vmatpush.msra.mxu0 %v157
    %205 = vmatpush.msra.mxu0 %v154
    %206 = vmatpush.msra.mxu0 %v151
    %207 = vmatpush.msra.mxu0 %v148
    %208 = vmatpush.msra.mxu0 %v145
    %209 = vmatmul.f32.gmra.mxu0 %v137
    %v210 = vpop.f32.mrf.mxu0
    %v211 = vadd.f32 0.0, %v210
    %212 = vmatmul.f32.gmra.mxu0 %v138
    %v213 = vpop.f32.mrf.mxu0
    %v214 = vadd.f32 0.0, %v213
    %215 = vmatmul.f32.gmra.mxu0 %v139
    %v216 = vpop.f32.mrf.mxu0
    %v217 = vadd.f32 0.0, %v216
    %218 = vmatmul.f32.gmra.mxu0 %v140
    %v219 = vpop.f32.mrf.mxu0
    %v220 = vadd.f32 0.0, %v219
    %221 = vmatmul.f32.gmra.mxu0 %v141
    %v222 = vpop.f32.mrf.mxu0
    %v223 = vadd.f32 0.0, %v222
    %224 = vmatmul.f32.gmra.mxu0 %v142
    %v225 = vpop.f32.mrf.mxu0
    %v226 = vadd.f32 0.0, %v225
    %227 = vmatmul.f32.gmra.mxu0 %v143
    %v228 = vpop.f32.mrf.mxu0
    %v229 = vadd.f32 0.0, %v228
    %230 = vmatmul.f32.gmra.mxu0 %v144
    %v231 = vpop.f32.mrf.mxu0
    %v232 = vadd.f32 0.0, %v231
    %233 = vdwg.mxu0
    %234 = vmatpush.msra.mxu0 %v191
    %235 = vmatpush.msra.mxu0 %v188
    %236 = vmatpush.msra.mxu0 %v185
    %237 = vmatpush.msra.mxu0 %v182
    %238 = vmatpush.msra.mxu0 %v179
    %239 = vmatpush.msra.mxu0 %v176
    %240 = vmatpush.msra.mxu0 %v173
    %241 = vmatpush.msra.mxu0 %v170
    %242 = vmatpush.msra.mxu0 %v167
    %243 = vmatpush.msra.mxu0 %v164
    %244 = vmatpush.msra.mxu0 %v161
    %245 = vmatpush.msra.mxu0 %v158
    %246 = vmatpush.msra.mxu0 %v155
    %247 = vmatpush.msra.mxu0 %v152
    %248 = vmatpush.msra.mxu0 %v149
    %249 = vmatpush.msra.mxu0 %v146
    %250 = vmatmul.f32.gmra.mxu0 %v137
    %v251 = vpop.f32.mrf.mxu0
    %v252 = vadd.f32 0.0, %v251
    %253 = vmatmul.f32.gmra.mxu0 %v138
    %v254 = vpop.f32.mrf.mxu0
    %v255 = vadd.f32 0.0, %v254
    %256 = vmatmul.f32.gmra.mxu0 %v139
    %v257 = vpop.f32.mrf.mxu0
    %v258 = vadd.f32 0.0, %v257
    %259 = vmatmul.f32.gmra.mxu0 %v140
    %v260 = vpop.f32.mrf.mxu0
    %v261 = vadd.f32 0.0, %v260
    %262 = vmatmul.f32.gmra.mxu0 %v141
    %v263 = vpop.f32.mrf.mxu0
    %v264 = vadd.f32 0.0, %v263
    %265 = vmatmul.f32.gmra.mxu0 %v142
    %v266 = vpop.f32.mrf.mxu0
    %v267 = vadd.f32 0.0, %v266
    %268 = vmatmul.f32.gmra.mxu0 %v143
    %v269 = vpop.f32.mrf.mxu0
    %v270 = vadd.f32 0.0, %v269
    %271 = vmatmul.f32.gmra.mxu0 %v144
    %v272 = vpop.f32.mrf.mxu0
    %v273 = vadd.f32 0.0, %v272
    %274 = vdwg.mxu0
    %275 = vmatpush.msra.mxu0 %v192
    %276 = vmatpush.msra.mxu0 %v189
    %277 = vmatpush.msra.mxu0 %v186
    %278 = vmatpush.msra.mxu0 %v183
    %279 = vmatpush.msra.mxu0 %v180
    %280 = vmatpush.msra.mxu0 %v177
    %281 = vmatpush.msra.mxu0 %v174
    %282 = vmatpush.msra.mxu0 %v171
    %283 = vmatpush.msra.mxu0 %v168
    %284 = vmatpush.msra.mxu0 %v165
    %285 = vmatpush.msra.mxu0 %v162
    %286 = vmatpush.msra.mxu0 %v159
    %287 = vmatpush.msra.mxu0 %v156
    %288 = vmatpush.msra.mxu0 %v153
    %289 = vmatpush.msra.mxu0 %v150
    %290 = vmatpush.msra.mxu0 %v147
    %291 = vmatmul.f32.gmra.mxu0 %v137
    %v292 = vpop.f32.mrf.mxu0
    %v293 = vadd.f32 0.0, %v292
    %294 = vmatmul.f32.gmra.mxu0 %v138
    %v295 = vpop.f32.mrf.mxu0
    %v296 = vadd.f32 0.0, %v295
    %297 = vmatmul.f32.gmra.mxu0 %v139
    %v298 = vpop.f32.mrf.mxu0
    %v299 = vadd.f32 0.0, %v298
    %300 = vmatmul.f32.gmra.mxu0 %v140
    %v301 = vpop.f32.mrf.mxu0
    %v302 = vadd.f32 0.0, %v301
    %303 = vmatmul.f32.gmra.mxu0 %v141
    %v304 = vpop.f32.mrf.mxu0
    %v305 = vadd.f32 0.0, %v304
    %306 = vmatmul.f32.gmra.mxu0 %v142
    %v307 = vpop.f32.mrf.mxu0
    %v308 = vadd.f32 0.0, %v307
    %309 = vmatmul.f32.gmra.mxu0 %v143
    %v310 = vpop.f32.mrf.mxu0
    %v311 = vadd.f32 0.0, %v310
    %312 = vmatmul.f32.gmra.mxu0 %v144
    %v313 = vpop.f32.mrf.mxu0
    %v314 = vadd.f32 0.0, %v313
    %315 = vdwg.mxu0
    %vm316 = vcmask 1040384
    %v317 = vsel %vm316, %v211, 0.0
    %v318 = vrot.slane %v214, 7
    %vm319 = vcmask 1041409
    %v320 = vsel %vm319, %v318, %v317
    %v321 = vrot.slane %v217, 6
    %vm322 = vcmask 1042434
    %v323 = vsel %vm322, %v321, %v320
    %v324 = vrot.slane %v220, 5
    %vm325 = vcmask 1043459
    %v326 = vsel %vm325, %v324, %v323
    %v327 = vrot.slane %v223, 4
    %vm328 = vcmask 1044484
    %v329 = vsel %vm328, %v327, %v326
    %v330 = vrot.slane %v226, 3
    %vm331 = vcmask 1045509
    %v332 = vsel %vm331, %v330, %v329
    %v333 = vrot.slane %v229, 2
    %vm334 = vcmask 1046534
    %v335 = vsel %vm334, %v333, %v332
    %v336 = vrot.slane %v232, 1
    %vm337 = vcmask 1047559
    %v338 = vsel %vm337, %v336, %v335
    %v339 = vsel %vm316, %v252, 0.0
    %v340 = vrot.slane %v255, 7
    %v341 = vsel %vm319, %v340, %v339
    %v342 = vrot.slane %v258, 6
    %v343 = vsel %vm322, %v342, %v341
    %v344 = vrot.slane %v261, 5
    %v345 = vsel %vm325, %v344, %v343
    %v346 = vrot.slane %v264, 4
    %v347 = vsel %vm328, %v346, %v345
    %v348 = vrot.slane %v267, 3
    %v349 = vsel %vm331, %v348, %v347
    %v350 = vrot.slane %v270, 2
    %v351 = vsel %vm334, %v350, %v349
    %v352 = vrot.slane %v273, 1
    %v353 = vsel %vm337, %v352, %v351
    %v354 = vsel %vm316, %v293, 0.0
    %v355 = vrot.slane %v296, 7
    %v356 = vsel %vm319, %v355, %v354
    %v357 = vrot.slane %v299, 6
    %v358 = vsel %vm322, %v357, %v356
    %v359 = vrot.slane %v302, 5
    %v360 = vsel %vm325, %v359, %v358
    %v361 = vrot.slane %v305, 4
    %v362 = vsel %vm328, %v361, %v360
    %v363 = vrot.slane %v308, 3
    %v364 = vsel %vm331, %v363, %v362
    %v365 = vrot.slane %v311, 2
    %v366 = vsel %vm334, %v365, %v364
    %v367 = vrot.slane %v314, 1
    %v368 = vsel %vm337, %v367, %v366
    %v369 = vrot.slane %v211, 1
    %v370 = vsel %vm316, %v369, 0.0
    %v371 = vsel %vm319, %v214, %v370
    %v372 = vrot.slane %v217, 7
    %v373 = vsel %vm322, %v372, %v371
    %v374 = vrot.slane %v220, 6
    %v375 = vsel %vm325, %v374, %v373
    %v376 = vrot.slane %v223, 5
    %v377 = vsel %vm328, %v376, %v375
    %v378 = vrot.slane %v226, 4
    %v379 = vsel %vm331, %v378, %v377
    %v380 = vrot.slane %v229, 3
    %v381 = vsel %vm334, %v380, %v379
    %v382 = vrot.slane %v232, 2
    %v383 = vsel %vm337, %v382, %v381
    %v384 = vrot.slane %v252, 1
    %v385 = vsel %vm316, %v384, 0.0
    %v386 = vsel %vm319, %v255, %v385
    %v387 = vrot.slane %v258, 7
    %v388 = vsel %vm322, %v387, %v386
    %v389 = vrot.slane %v261, 6
    %v390 = vsel %vm325, %v389, %v388
    %v391 = vrot.slane %v264, 5
    %v392 = vsel %vm328, %v391, %v390
    %v393 = vrot.slane %v267, 4
    %v394 = vsel %vm331, %v393, %v392
    %v395 = vrot.slane %v270, 3
    %v396 = vsel %vm334, %v395, %v394
    %v397 = vrot.slane %v273, 2
    %v398 = vsel %vm337, %v397, %v396
    %v399 = vrot.slane %v293, 1
    %v400 = vsel %vm316, %v399, 0.0
    %v401 = vsel %vm319, %v296, %v400
    %v402 = vrot.slane %v299, 7
    %v403 = vsel %vm322, %v402, %v401
    %v404 = vrot.slane %v302, 6
    %v405 = vsel %vm325, %v404, %v403
    %v406 = vrot.slane %v305, 5
    %v407 = vsel %vm328, %v406, %v405
    %v408 = vrot.slane %v308, 4
    %v409 = vsel %vm331, %v408, %v407
    %v410 = vrot.slane %v311, 3
    %v411 = vsel %vm334, %v410, %v409
    %v412 = vrot.slane %v314, 2
    %v413 = vsel %vm337, %v412, %v411
    %v414 = vrot.slane %v211, 2
    %v415 = vsel %vm316, %v414, 0.0
    %v416 = vrot.slane %v214, 1
    %v417 = vsel %vm319, %v416, %v415
    %v418 = vsel %vm322, %v217, %v417
    %v419 = vrot.slane %v220, 7
    %v420 = vsel %vm325, %v419, %v418
    %v421 = vrot.slane %v223, 6
    %v422 = vsel %vm328, %v421, %v420
    %v423 = vrot.slane %v226, 5
    %v424 = vsel %vm331, %v423, %v422
    %v425 = vrot.slane %v229, 4
    %v426 = vsel %vm334, %v425, %v424
    %v427 = vrot.slane %v232, 3
    %v428 = vsel %vm337, %v427, %v426
    %v429 = vrot.slane %v252, 2
    %v430 = vsel %vm316, %v429, 0.0
    %v431 = vrot.slane %v255, 1
    %v432 = vsel %vm319, %v431, %v430
    %v433 = vsel %vm322, %v258, %v432
    %v434 = vrot.slane %v261, 7
    %v435 = vsel %vm325, %v434, %v433
    %v436 = vrot.slane %v264, 6
    %v437 = vsel %vm328, %v436, %v435
    %v438 = vrot.slane %v267, 5
    %v439 = vsel %vm331, %v438, %v437
    %v440 = vrot.slane %v270, 4
    %v441 = vsel %vm334, %v440, %v439
    %v442 = vrot.slane %v273, 3
    %v443 = vsel %vm337, %v442, %v441
    %v444 = vrot.slane %v293, 2
    %v445 = vsel %vm316, %v444, 0.0
    %v446 = vrot.slane %v296, 1
    %v447 = vsel %vm319, %v446, %v445
    %v448 = vsel %vm322, %v299, %v447
    %v449 = vrot.slane %v302, 7
    %v450 = vsel %vm325, %v449, %v448
    %v451 = vrot.slane %v305, 6
    %v452 = vsel %vm328, %v451, %v450
    %v453 = vrot.slane %v308, 5
    %v454 = vsel %vm331, %v453, %v452
    %v455 = vrot.slane %v311, 4
    %v456 = vsel %vm334, %v455, %v454
    %v457 = vrot.slane %v314, 3
    %v458 = vsel %vm337, %v457, %v456
    %v459 = vrot.slane %v211, 3
    %v460 = vsel %vm316, %v459, 0.0
    %v461 = vrot.slane %v214, 2
    %v462 = vsel %vm319, %v461, %v460
    %v463 = vrot.slane %v217, 1
    %v464 = vsel %vm322, %v463, %v462
    %v465 = vsel %vm325, %v220, %v464
    %v466 = vrot.slane %v223, 7
    %v467 = vsel %vm328, %v466, %v465
    %v468 = vrot.slane %v226, 6
    %v469 = vsel %vm331, %v468, %v467
    %v470 = vrot.slane %v229, 5
    %v471 = vsel %vm334, %v470, %v469
    %v472 = vrot.slane %v232, 4
    %v473 = vsel %vm337, %v472, %v471
    %v474 = vrot.slane %v252, 3
    %v475 = vsel %vm316, %v474, 0.0
    %v476 = vrot.slane %v255, 2
    %v477 = vsel %vm319, %v476, %v475
    %v478 = vrot.slane %v258, 1
    %v479 = vsel %vm322, %v478, %v477
    %v480 = vsel %vm325, %v261, %v479
    %v481 = vrot.slane %v264, 7
    %v482 = vsel %vm328, %v481, %v480
    %v483 = vrot.slane %v267, 6
    %v484 = vsel %vm331, %v483, %v482
    %v485 = vrot.slane %v270, 5
    %v486 = vsel %vm334, %v485, %v484
    %v487 = vrot.slane %v273, 4
    %v488 = vsel %vm337, %v487, %v486
    %v489 = vrot.slane %v293, 3
    %v490 = vsel %vm316, %v489, 0.0
    %v491 = vrot.slane %v296, 2
    %v492 = vsel %vm319, %v491, %v490
    %v493 = vrot.slane %v299, 1
    %v494 = vsel %vm322, %v493, %v492
    %v495 = vsel %vm325, %v302, %v494
    %v496 = vrot.slane %v305, 7
    %v497 = vsel %vm328, %v496, %v495
    %v498 = vrot.slane %v308, 6
    %v499 = vsel %vm331, %v498, %v497
    %v500 = vrot.slane %v311, 5
    %v501 = vsel %vm334, %v500, %v499
    %v502 = vrot.slane %v314, 4
    %v503 = vsel %vm337, %v502, %v501
    %v504 = vrot.slane %v211, 4
    %v505 = vsel %vm316, %v504, 0.0
    %v506 = vrot.slane %v214, 3
    %v507 = vsel %vm319, %v506, %v505
    %v508 = vrot.slane %v217, 2
    %v509 = vsel %vm322, %v508, %v507
    %v510 = vrot.slane %v220, 1
    %v511 = vsel %vm325, %v510, %v509
    %v512 = vsel %vm328, %v223, %v511
    %v513 = vrot.slane %v226, 7
    %v514 = vsel %vm331, %v513, %v512
    %v515 = vrot.slane %v229, 6
    %v516 = vsel %vm334, %v515, %v514
    %v517 = vrot.slane %v232, 5
    %v518 = vsel %vm337, %v517, %v516
    %v519 = vrot.slane %v252, 4
    %v520 = vsel %vm316, %v519, 0.0
    %v521 = vrot.slane %v255, 3
    %v522 = vsel %vm319, %v521, %v520
    %v523 = vrot.slane %v258, 2
    %v524 = vsel %vm322, %v523, %v522
    %v525 = vrot.slane %v261, 1
    %v526 = vsel %vm325, %v525, %v524
    %v527 = vsel %vm328, %v264, %v526
    %v528 = vrot.slane %v267, 7
    %v529 = vsel %vm331, %v528, %v527
    %v530 = vrot.slane %v270, 6
    %v531 = vsel %vm334, %v530, %v529
    %v532 = vrot.slane %v273, 5
    %v533 = vsel %vm337, %v532, %v531
    %v534 = vrot.slane %v293, 4
    %v535 = vsel %vm316, %v534, 0.0
    %v536 = vrot.slane %v296, 3
    %v537 = vsel %vm319, %v536, %v535
    %v538 = vrot.slane %v299, 2
    %v539 = vsel %vm322, %v538, %v537
    %v540 = vrot.slane %v302, 1
    %v541 = vsel %vm325, %v540, %v539
    %v542 = vsel %vm328, %v305, %v541
    %v543 = vrot.slane %v308, 7
    %v544 = vsel %vm331, %v543, %v542
    %v545 = vrot.slane %v311, 6
    %v546 = vsel %vm334, %v545, %v544
    %v547 = vrot.slane %v314, 5
    %v548 = vsel %vm337, %v547, %v546
    %v549 = vrot.slane %v211, 5
    %v550 = vsel %vm316, %v549, 0.0
    %v551 = vrot.slane %v214, 4
    %v552 = vsel %vm319, %v551, %v550
    %v553 = vrot.slane %v217, 3
    %v554 = vsel %vm322, %v553, %v552
    %v555 = vrot.slane %v220, 2
    %v556 = vsel %vm325, %v555, %v554
    %v557 = vrot.slane %v223, 1
    %v558 = vsel %vm328, %v557, %v556
    %v559 = vsel %vm331, %v226, %v558
    %v560 = vrot.slane %v229, 7
    %v561 = vsel %vm334, %v560, %v559
    %v562 = vrot.slane %v232, 6
    %v563 = vsel %vm337, %v562, %v561
    %v564 = vrot.slane %v252, 5
    %v565 = vsel %vm316, %v564, 0.0
    %v566 = vrot.slane %v255, 4
    %v567 = vsel %vm319, %v566, %v565
    %v568 = vrot.slane %v258, 3
    %v569 = vsel %vm322, %v568, %v567
    %v570 = vrot.slane %v261, 2
    %v571 = vsel %vm325, %v570, %v569
    %v572 = vrot.slane %v264, 1
    %v573 = vsel %vm328, %v572, %v571
    %v574 = vsel %vm331, %v267, %v573
    %v575 = vrot.slane %v270, 7
    %v576 = vsel %vm334, %v575, %v574
    %v577 = vrot.slane %v273, 6
    %v578 = vsel %vm337, %v577, %v576
    %v579 = vrot.slane %v293, 5
    %v580 = vsel %vm316, %v579, 0.0
    %v581 = vrot.slane %v296, 4
    %v582 = vsel %vm319, %v581, %v580
    %v583 = vrot.slane %v299, 3
    %v584 = vsel %vm322, %v583, %v582
    %v585 = vrot.slane %v302, 2
    %v586 = vsel %vm325, %v585, %v584
    %v587 = vrot.slane %v305, 1
    %v588 = vsel %vm328, %v587, %v586
    %v589 = vsel %vm331, %v308, %v588
    %v590 = vrot.slane %v311, 7
    %v591 = vsel %vm334, %v590, %v589
    %v592 = vrot.slane %v314, 6
    %v593 = vsel %vm337, %v592, %v591
    %v594 = vrot.slane %v211, 6
    %v595 = vsel %vm316, %v594, 0.0
    %v596 = vrot.slane %v214, 5
    %v597 = vsel %vm319, %v596, %v595
    %v598 = vrot.slane %v217, 4
    %v599 = vsel %vm322, %v598, %v597
    %v600 = vrot.slane %v220, 3
    %v601 = vsel %vm325, %v600, %v599
    %v602 = vrot.slane %v223, 2
    %v603 = vsel %vm328, %v602, %v601
    %v604 = vrot.slane %v226, 1
    %v605 = vsel %vm331, %v604, %v603
    %v606 = vsel %vm334, %v229, %v605
    %v607 = vrot.slane %v232, 7
    %v608 = vsel %vm337, %v607, %v606
    %v609 = vrot.slane %v252, 6
    %v610 = vsel %vm316, %v609, 0.0
    %v611 = vrot.slane %v255, 5
    %v612 = vsel %vm319, %v611, %v610
    %v613 = vrot.slane %v258, 4
    %v614 = vsel %vm322, %v613, %v612
    %v615 = vrot.slane %v261, 3
    %v616 = vsel %vm325, %v615, %v614
    %v617 = vrot.slane %v264, 2
    %v618 = vsel %vm328, %v617, %v616
    %v619 = vrot.slane %v267, 1
    %v620 = vsel %vm331, %v619, %v618
    %v621 = vsel %vm334, %v270, %v620
    %v622 = vrot.slane %v273, 7
    %v623 = vsel %vm337, %v622, %v621
    %v624 = vrot.slane %v293, 6
    %v625 = vsel %vm316, %v624, 0.0
    %v626 = vrot.slane %v296, 5
    %v627 = vsel %vm319, %v626, %v625
    %v628 = vrot.slane %v299, 4
    %v629 = vsel %vm322, %v628, %v627
    %v630 = vrot.slane %v302, 3
    %v631 = vsel %vm325, %v630, %v629
    %v632 = vrot.slane %v305, 2
    %v633 = vsel %vm328, %v632, %v631
    %v634 = vrot.slane %v308, 1
    %v635 = vsel %vm331, %v634, %v633
    %v636 = vsel %vm334, %v311, %v635
    %v637 = vrot.slane %v314, 7
    %v638 = vsel %vm337, %v637, %v636
    %v639 = vrot.slane %v211, 7
    %v640 = vsel %vm316, %v639, 0.0
    %v641 = vrot.slane %v214, 6
    %v642 = vsel %vm319, %v641, %v640
    %v643 = vrot.slane %v217, 5
    %v644 = vsel %vm322, %v643, %v642
    %v645 = vrot.slane %v220, 4
    %v646 = vsel %vm325, %v645, %v644
    %v647 = vrot.slane %v223, 3
    %v648 = vsel %vm328, %v647, %v646
    %v649 = vrot.slane %v226, 2
    %v650 = vsel %vm331, %v649, %v648
    %v651 = vrot.slane %v229, 1
    %v652 = vsel %vm334, %v651, %v650
    %v653 = vsel %vm337, %v232, %v652
    %v654 = vrot.slane %v252, 7
    %v655 = vsel %vm316, %v654, 0.0
    %v656 = vrot.slane %v255, 6
    %v657 = vsel %vm319, %v656, %v655
    %v658 = vrot.slane %v258, 5
    %v659 = vsel %vm322, %v658, %v657
    %v660 = vrot.slane %v261, 4
    %v661 = vsel %vm325, %v660, %v659
    %v662 = vrot.slane %v264, 3
    %v663 = vsel %vm328, %v662, %v661
    %v664 = vrot.slane %v267, 2
    %v665 = vsel %vm331, %v664, %v663
    %v666 = vrot.slane %v270, 1
    %v667 = vsel %vm334, %v666, %v665
    %v668 = vsel %vm337, %v273, %v667
    %v669 = vrot.slane %v293, 7
    %v670 = vsel %vm316, %v669, 0.0
    %v671 = vrot.slane %v296, 6
    %v672 = vsel %vm319, %v671, %v670
    %v673 = vrot.slane %v299, 5
    %v674 = vsel %vm322, %v673, %v672
    %v675 = vrot.slane %v302, 4
    %v676 = vsel %vm325, %v675, %v674
    %v677 = vrot.slane %v305, 3
    %v678 = vsel %vm328, %v677, %v676
    %v679 = vrot.slane %v308, 2
    %v680 = vsel %vm331, %v679, %v678
    %v681 = vrot.slane %v311, 1
    %v682 = vsel %vm334, %v681, %v680
    %v683 = vsel %vm337, %v314, %v682
    %v684 = vld [vmem:[#allocation4] sm:$0xff]
    %v685 = vld [vmem:[#allocation4 + $0x8] sm:$0xff]
    %v686 = vld [vmem:[#allocation4 + $0x10] sm:$0xff]
    %v687 = vld [vmem:[#allocation4 + $0x18] sm:$0xff]
    %v688 = vld [vmem:[#allocation4 + $0x20] sm:$0xff]
    %v689 = vld [vmem:[#allocation4 + $0x28] sm:$0xff]
    %v690 = vld [vmem:[#allocation4 + $0x30] sm:$0xff]
    %v691 = vld [vmem:[#allocation4 + $0x38] sm:$0xff]
    %v692 = vld [vmem:[#allocation4 + $0x40] sm:$0xff]
    %v693 = vld [vmem:[#allocation4 + $0x48] sm:$0xff]
    %v694 = vld [vmem:[#allocation4 + $0x50] sm:$0xff]
    %v695 = vld [vmem:[#allocation4 + $0x58] sm:$0xff]
    %v696 = vld [vmem:[#allocation4 + $0x60] sm:$0xff]
    %v697 = vld [vmem:[#allocation4 + $0x68] sm:$0xff]
    %v698 = vld [vmem:[#allocation4 + $0x70] sm:$0xff]
    %v699 = vld [vmem:[#allocation4 + $0x78] sm:$0xff]
    %v700 = vld [vmem:[#allocation4 + $0x80] sm:$0xff]
    %v701 = vld [vmem:[#allocation4 + $0x88] sm:$0xff]
    %v702 = vld [vmem:[#allocation4 + $0x90] sm:$0xff]
    %v703 = vld [vmem:[#allocation4 + $0x98] sm:$0xff]
    %v704 = vld [vmem:[#allocation4 + $0xa0] sm:$0xff]
    %v705 = vld [vmem:[#allocation4 + $0xa8] sm:$0xff]
    %v706 = vld [vmem:[#allocation4 + $0xb0] sm:$0xff]
    %v707 = vld [vmem:[#allocation4 + $0xb8] sm:$0xff]
    %v708 = vld [vmem:[#allocation4 + $0xc0] sm:$0xff]
    %v709 = vld [vmem:[#allocation4 + $0xc8] sm:$0xff]
    %v710 = vld [vmem:[#allocation4 + $0xd0] sm:$0xff]
    %v711 = vld [vmem:[#allocation4 + $0xd8] sm:$0xff]
    %v712 = vld [vmem:[#allocation4 + $0xe0] sm:$0xff]
    %v713 = vld [vmem:[#allocation4 + $0xe8] sm:$0xff]
    %v714 = vld [vmem:[#allocation4 + $0xf0] sm:$0xff]
    %v715 = vld [vmem:[#allocation4 + $0xf8] sm:$0xff]
    %v716 = vld [vmem:[#allocation4 + $0x100] sm:$0xff]
    %v717 = vld [vmem:[#allocation4 + $0x108] sm:$0xff]
    %v718 = vld [vmem:[#allocation4 + $0x110] sm:$0xff]
    %v719 = vld [vmem:[#allocation4 + $0x118] sm:$0xff]
    %v720 = vld [vmem:[#allocation4 + $0x120] sm:$0xff]
    %v721 = vld [vmem:[#allocation4 + $0x128] sm:$0xff]
    %v722 = vld [vmem:[#allocation4 + $0x130] sm:$0xff]
    %v723 = vld [vmem:[#allocation4 + $0x138] sm:$0xff]
    %v724 = vld [vmem:[#allocation4 + $0x140] sm:$0xff]
    %v725 = vld [vmem:[#allocation4 + $0x148] sm:$0xff]
    %v726 = vld [vmem:[#allocation4 + $0x150] sm:$0xff]
    %v727 = vld [vmem:[#allocation4 + $0x158] sm:$0xff]
    %v728 = vld [vmem:[#allocation4 + $0x160] sm:$0xff]
    %v729 = vld [vmem:[#allocation4 + $0x168] sm:$0xff]
    %v730 = vld [vmem:[#allocation4 + $0x170] sm:$0xff]
    %v731 = vld [vmem:[#allocation4 + $0x178] sm:$0xff]
    %v732 = vld [vmem:[#allocation4 + $0x180] sm:$0xff]
    %v733 = vld [vmem:[#allocation4 + $0x188] sm:$0xff]
    %v734 = vld [vmem:[#allocation4 + $0x190] sm:$0xff]
    %v735 = vld [vmem:[#allocation4 + $0x198] sm:$0xff]
    %v736 = vld [vmem:[#allocation4 + $0x1a0] sm:$0xff]
    %v737 = vld [vmem:[#allocation4 + $0x1a8] sm:$0xff]
    %v738 = vld [vmem:[#allocation4 + $0x1b0] sm:$0xff]
    %v739 = vld [vmem:[#allocation4 + $0x1b8] sm:$0xff]
    %v740 = vld [vmem:[#allocation4 + $0x1c0] sm:$0xff]
    %v741 = vld [vmem:[#allocation4 + $0x1c8] sm:$0xff]
    %v742 = vld [vmem:[#allocation4 + $0x1d0] sm:$0xff]
    %v743 = vld [vmem:[#allocation4 + $0x1d8] sm:$0xff]
    %v744 = vld [vmem:[#allocation4 + $0x1e0] sm:$0xff]
    %v745 = vld [vmem:[#allocation4 + $0x1e8] sm:$0xff]
    %v746 = vld [vmem:[#allocation4 + $0x1f0] sm:$0xff]
    %v747 = vld [vmem:[#allocation4 + $0x1f8] sm:$0xff]
    %v748 = vld [vmem:[#allocation4 + $0x200] sm:$0xff]
    %v749 = vld [vmem:[#allocation4 + $0x208] sm:$0xff]
    %v750 = vld [vmem:[#allocation4 + $0x210] sm:$0xff]
    %v751 = vld [vmem:[#allocation4 + $0x218] sm:$0xff]
    %v752 = vld [vmem:[#allocation4 + $0x220] sm:$0xff]
    %v753 = vld [vmem:[#allocation4 + $0x228] sm:$0xff]
    %v754 = vld [vmem:[#allocation4 + $0x230] sm:$0xff]
    %v755 = vld [vmem:[#allocation4 + $0x238] sm:$0xff]
    %v756 = vld [vmem:[#allocation4 + $0x240] sm:$0xff]
    %v757 = vld [vmem:[#allocation4 + $0x248] sm:$0xff]
    %v758 = vld [vmem:[#allocation4 + $0x250] sm:$0xff]
    %v759 = vld [vmem:[#allocation4 + $0x258] sm:$0xff]
    %v760 = vld [vmem:[#allocation4 + $0x260] sm:$0xff]
    %v761 = vld [vmem:[#allocation4 + $0x268] sm:$0xff]
    %v762 = vld [vmem:[#allocation4 + $0x270] sm:$0xff]
    %v763 = vld [vmem:[#allocation4 + $0x278] sm:$0xff]
    %v764 = vld [vmem:[#allocation4 + $0x280] sm:$0xff]
    %v765 = vld [vmem:[#allocation4 + $0x288] sm:$0xff]
    %v766 = vld [vmem:[#allocation4 + $0x290] sm:$0xff]
    %v767 = vld [vmem:[#allocation4 + $0x298] sm:$0xff]
    %v768 = vld [vmem:[#allocation4 + $0x2a0] sm:$0xff]
    %v769 = vld [vmem:[#allocation4 + $0x2a8] sm:$0xff]
    %v770 = vld [vmem:[#allocation4 + $0x2b0] sm:$0xff]
    %v771 = vld [vmem:[#allocation4 + $0x2b8] sm:$0xff]
    %v772 = vld [vmem:[#allocation4 + $0x2c0] sm:$0xff]
    %v773 = vld [vmem:[#allocation4 + $0x2c8] sm:$0xff]
    %v774 = vld [vmem:[#allocation4 + $0x2d0] sm:$0xff]
    %v775 = vld [vmem:[#allocation4 + $0x2d8] sm:$0xff]
    %v776 = vld [vmem:[#allocation4 + $0x2e0] sm:$0xff]
    %v777 = vld [vmem:[#allocation4 + $0x2e8] sm:$0xff]
    %v778 = vld [vmem:[#allocation4 + $0x2f0] sm:$0xff]
    %v779 = vld [vmem:[#allocation4 + $0x2f8] sm:$0xff]
    %v780 = vld [vmem:[#allocation4 + $0x300] sm:$0xff]
    %v781 = vld [vmem:[#allocation4 + $0x308] sm:$0xff]
    %v782 = vld [vmem:[#allocation4 + $0x310] sm:$0xff]
    %v783 = vld [vmem:[#allocation4 + $0x318] sm:$0xff]
    %v784 = vld [vmem:[#allocation4 + $0x320] sm:$0xff]
    %v785 = vld [vmem:[#allocation4 + $0x328] sm:$0xff]
    %v786 = vld [vmem:[#allocation4 + $0x330] sm:$0xff]
    %v787 = vld [vmem:[#allocation4 + $0x338] sm:$0xff]
    %v788 = vld [vmem:[#allocation4 + $0x340] sm:$0xff]
    %v789 = vld [vmem:[#allocation4 + $0x348] sm:$0xff]
    %v790 = vld [vmem:[#allocation4 + $0x350] sm:$0xff]
    %v791 = vld [vmem:[#allocation4 + $0x358] sm:$0xff]
    %v792 = vld [vmem:[#allocation4 + $0x360] sm:$0xff]
    %v793 = vld [vmem:[#allocation4 + $0x368] sm:$0xff]
    %v794 = vld [vmem:[#allocation4 + $0x370] sm:$0xff]
    %v795 = vld [vmem:[#allocation4 + $0x378] sm:$0xff]
    %v796 = vld [vmem:[#allocation4 + $0x380] sm:$0xff]
    %v797 = vld [vmem:[#allocation4 + $0x388] sm:$0xff]
    %v798 = vld [vmem:[#allocation4 + $0x390] sm:$0xff]
    %v799 = vld [vmem:[#allocation4 + $0x398] sm:$0xff]
    %v800 = vld [vmem:[#allocation4 + $0x3a0] sm:$0xff]
    %v801 = vld [vmem:[#allocation4 + $0x3a8] sm:$0xff]
    %v802 = vld [vmem:[#allocation4 + $0x3b0] sm:$0xff]
    %v803 = vld [vmem:[#allocation4 + $0x3b8] sm:$0xff]
    %v804 = vld [vmem:[#allocation4 + $0x3c0] sm:$0xff]
    %v805 = vld [vmem:[#allocation4 + $0x3c8] sm:$0xff]
    %v806 = vld [vmem:[#allocation4 + $0x3d0] sm:$0xff]
    %v807 = vld [vmem:[#allocation4 + $0x3d8] sm:$0xff]
    %v808 = vld [vmem:[#allocation4 + $0x3e0] sm:$0xff]
    %v809 = vld [vmem:[#allocation4 + $0x3e8] sm:$0xff]
    %v810 = vld [vmem:[#allocation4 + $0x3f0] sm:$0xff]
    %v811 = vld [vmem:[#allocation4 + $0x3f8] sm:$0xff]
    %v812 = vld [vmem:[#allocation4 + $0x400] sm:$0xff]
    %v813 = vld [vmem:[#allocation4 + $0x408] sm:$0xff]
    %v814 = vld [vmem:[#allocation4 + $0x410] sm:$0xff]
    %v815 = vld [vmem:[#allocation4 + $0x418] sm:$0xff]
    %v816 = vld [vmem:[#allocation4 + $0x420] sm:$0xff]
    %v817 = vld [vmem:[#allocation4 + $0x428] sm:$0xff]
    %v818 = vld [vmem:[#allocation4 + $0x430] sm:$0xff]
    %v819 = vld [vmem:[#allocation4 + $0x438] sm:$0xff]
    %v820 = vld [vmem:[#allocation4 + $0x440] sm:$0xff]
    %v821 = vld [vmem:[#allocation4 + $0x448] sm:$0xff]
    %v822 = vld [vmem:[#allocation4 + $0x450] sm:$0xff]
    %v823 = vld [vmem:[#allocation4 + $0x458] sm:$0xff]
    %v824 = vld [vmem:[#allocation4 + $0x460] sm:$0xff]
    %v825 = vld [vmem:[#allocation4 + $0x468] sm:$0xff]
    %v826 = vld [vmem:[#allocation4 + $0x470] sm:$0xff]
    %v827 = vld [vmem:[#allocation4 + $0x478] sm:$0xff]
    %v828 = vld [vmem:[#allocation4 + $0x480] sm:$0xff]
    %v829 = vld [vmem:[#allocation4 + $0x488] sm:$0xff]
    %v830 = vld [vmem:[#allocation4 + $0x490] sm:$0xff]
    %v831 = vld [vmem:[#allocation4 + $0x498] sm:$0xff]
    %v832 = vld [vmem:[#allocation4 + $0x4a0] sm:$0xff]
    %v833 = vld [vmem:[#allocation4 + $0x4a8] sm:$0xff]
    %v834 = vld [vmem:[#allocation4 + $0x4b0] sm:$0xff]
    %v835 = vld [vmem:[#allocation4 + $0x4b8] sm:$0xff]
    %v836 = vld [vmem:[#allocation4 + $0x4c0] sm:$0xff]
    %v837 = vld [vmem:[#allocation4 + $0x4c8] sm:$0xff]
    %v838 = vld [vmem:[#allocation4 + $0x4d0] sm:$0xff]
    %v839 = vld [vmem:[#allocation4 + $0x4d8] sm:$0xff]
    %v840 = vld [vmem:[#allocation4 + $0x4e0] sm:$0xff]
    %v841 = vld [vmem:[#allocation4 + $0x4e8] sm:$0xff]
    %v842 = vld [vmem:[#allocation4 + $0x4f0] sm:$0xff]
    %v843 = vld [vmem:[#allocation4 + $0x4f8] sm:$0xff]
    %v844 = vld [vmem:[#allocation4 + $0x500] sm:$0xff]
    %v845 = vld [vmem:[#allocation4 + $0x508] sm:$0xff]
    %v846 = vld [vmem:[#allocation4 + $0x510] sm:$0xff]
    %v847 = vld [vmem:[#allocation4 + $0x518] sm:$0xff]
    %v848 = vld [vmem:[#allocation4 + $0x520] sm:$0xff]
    %v849 = vld [vmem:[#allocation4 + $0x528] sm:$0xff]
    %v850 = vld [vmem:[#allocation4 + $0x530] sm:$0xff]
    %v851 = vld [vmem:[#allocation4 + $0x538] sm:$0xff]
    %v852 = vld [vmem:[#allocation4 + $0x540] sm:$0xff]
    %v853 = vld [vmem:[#allocation4 + $0x548] sm:$0xff]
    %v854 = vld [vmem:[#allocation4 + $0x550] sm:$0xff]
    %v855 = vld [vmem:[#allocation4 + $0x558] sm:$0xff]
    %v856 = vld [vmem:[#allocation4 + $0x560] sm:$0xff]
    %v857 = vld [vmem:[#allocation4 + $0x568] sm:$0xff]
    %v858 = vld [vmem:[#allocation4 + $0x570] sm:$0xff]
    %v859 = vld [vmem:[#allocation4 + $0x578] sm:$0xff]
    %v860 = vld [vmem:[#allocation4 + $0x580] sm:$0xff]
    %v861 = vld [vmem:[#allocation4 + $0x588] sm:$0xff]
    %v862 = vld [vmem:[#allocation4 + $0x590] sm:$0xff]
    %v863 = vld [vmem:[#allocation4 + $0x598] sm:$0xff]
    %v864 = vld [vmem:[#allocation4 + $0x5a0] sm:$0xff]
    %v865 = vld [vmem:[#allocation4 + $0x5a8] sm:$0xff]
    %v866 = vld [vmem:[#allocation4 + $0x5b0] sm:$0xff]
    %v867 = vld [vmem:[#allocation4 + $0x5b8] sm:$0xff]
    %v868 = vld [vmem:[#allocation4 + $0x5c0] sm:$0xff]
    %v869 = vld [vmem:[#allocation4 + $0x5c8] sm:$0xff]
    %v870 = vld [vmem:[#allocation4 + $0x5d0] sm:$0xff]
    %v871 = vld [vmem:[#allocation4 + $0x5d8] sm:$0xff]
    %v872 = vld [vmem:[#allocation4 + $0x5e0] sm:$0xff]
    %v873 = vld [vmem:[#allocation4 + $0x5e8] sm:$0xff]
    %v874 = vld [vmem:[#allocation4 + $0x5f0] sm:$0xff]
    %v875 = vld [vmem:[#allocation4 + $0x5f8] sm:$0xff]
    %v876 = vld [vmem:[#allocation4 + $0x600] sm:$0xff]
    %v877 = vld [vmem:[#allocation4 + $0x608] sm:$0xff]
    %v878 = vld [vmem:[#allocation4 + $0x610] sm:$0xff]
    %v879 = vld [vmem:[#allocation4 + $0x618] sm:$0xff]
    %v880 = vld [vmem:[#allocation4 + $0x620] sm:$0xff]
    %v881 = vld [vmem:[#allocation4 + $0x628] sm:$0xff]
    %v882 = vld [vmem:[#allocation4 + $0x630] sm:$0xff]
    %v883 = vld [vmem:[#allocation4 + $0x638] sm:$0xff]
    %v884 = vld [vmem:[#allocation4 + $0x640] sm:$0xff]
    %v885 = vld [vmem:[#allocation4 + $0x648] sm:$0xff]
    %v886 = vld [vmem:[#allocation4 + $0x650] sm:$0xff]
    %v887 = vld [vmem:[#allocation4 + $0x658] sm:$0xff]
    %v888 = vld [vmem:[#allocation4 + $0x660] sm:$0xff]
    %v889 = vld [vmem:[#allocation4 + $0x668] sm:$0xff]
    %v890 = vld [vmem:[#allocation4 + $0x670] sm:$0xff]
    %v891 = vld [vmem:[#allocation4 + $0x678] sm:$0xff]
    %v892 = vld [vmem:[#allocation4 + $0x680] sm:$0xff]
    %v893 = vld [vmem:[#allocation4 + $0x688] sm:$0xff]
    %v894 = vld [vmem:[#allocation4 + $0x690] sm:$0xff]
    %v895 = vld [vmem:[#allocation4 + $0x698] sm:$0xff]
    %v896 = vld [vmem:[#allocation4 + $0x6a0] sm:$0xff]
    %v897 = vld [vmem:[#allocation4 + $0x6a8] sm:$0xff]
    %v898 = vld [vmem:[#allocation4 + $0x6b0] sm:$0xff]
    %v899 = vld [vmem:[#allocation4 + $0x6b8] sm:$0xff]
    %v900 = vld [vmem:[#allocation4 + $0x6c0] sm:$0xff]
    %v901 = vld [vmem:[#allocation4 + $0x6c8] sm:$0xff]
    %v902 = vld [vmem:[#allocation4 + $0x6d0] sm:$0xff]
    %v903 = vld [vmem:[#allocation4 + $0x6d8] sm:$0xff]
    %v904 = vld [vmem:[#allocation4 + $0x6e0] sm:$0xff]
    %v905 = vld [vmem:[#allocation4 + $0x6e8] sm:$0xff]
    %v906 = vld [vmem:[#allocation4 + $0x6f0] sm:$0xff]
    %v907 = vld [vmem:[#allocation4 + $0x6f8] sm:$0xff]
    %v908 = vld [vmem:[#allocation4 + $0x700] sm:$0xff]
    %v909 = vld [vmem:[#allocation4 + $0x708] sm:$0xff]
    %v910 = vld [vmem:[#allocation4 + $0x710] sm:$0xff]
    %v911 = vld [vmem:[#allocation4 + $0x718] sm:$0xff]
    %v912 = vld [vmem:[#allocation4 + $0x720] sm:$0xff]
    %v913 = vld [vmem:[#allocation4 + $0x728] sm:$0xff]
    %v914 = vld [vmem:[#allocation4 + $0x730] sm:$0xff]
    %v915 = vld [vmem:[#allocation4 + $0x738] sm:$0xff]
    %v916 = vld [vmem:[#allocation4 + $0x740] sm:$0xff]
    %v917 = vld [vmem:[#allocation4 + $0x748] sm:$0xff]
    %v918 = vld [vmem:[#allocation4 + $0x750] sm:$0xff]
    %v919 = vld [vmem:[#allocation4 + $0x758] sm:$0xff]
    %v920 = vld [vmem:[#allocation4 + $0x760] sm:$0xff]
    %v921 = vld [vmem:[#allocation4 + $0x768] sm:$0xff]
    %v922 = vld [vmem:[#allocation4 + $0x770] sm:$0xff]
    %v923 = vld [vmem:[#allocation4 + $0x778] sm:$0xff]
    %v924 = vld [vmem:[#allocation4 + $0x780] sm:$0xff]
    %v925 = vld [vmem:[#allocation4 + $0x788] sm:$0xff]
    %v926 = vld [vmem:[#allocation4 + $0x790] sm:$0xff]
    %v927 = vld [vmem:[#allocation4 + $0x798] sm:$0xff]
    %v928 = vld [vmem:[#allocation4 + $0x7a0] sm:$0xff]
    %v929 = vld [vmem:[#allocation4 + $0x7a8] sm:$0xff]
    %v930 = vld [vmem:[#allocation4 + $0x7b0] sm:$0xff]
    %v931 = vld [vmem:[#allocation4 + $0x7b8] sm:$0xff]
    %v932 = vld [vmem:[#allocation4 + $0x7c0] sm:$0xff]
    %v933 = vld [vmem:[#allocation4 + $0x7c8] sm:$0xff]
    %v934 = vld [vmem:[#allocation4 + $0x7d0] sm:$0xff]
    %v935 = vld [vmem:[#allocation4 + $0x7d8] sm:$0xff]
    %v936 = vld [vmem:[#allocation4 + $0x7e0] sm:$0xff]
    %v937 = vld [vmem:[#allocation4 + $0x7e8] sm:$0xff]
    %v938 = vld [vmem:[#allocation4 + $0x7f0] sm:$0xff]
    %v939 = vld [vmem:[#allocation4 + $0x7f8] sm:$0xff]
    %v940 = vld [vmem:[#allocation4 + $0x800] sm:$0xff]
    %v941 = vld [vmem:[#allocation4 + $0x808] sm:$0xff]
    %v942 = vld [vmem:[#allocation4 + $0x810] sm:$0xff]
    %v943 = vld [vmem:[#allocation4 + $0x818] sm:$0xff]
    %v944 = vld [vmem:[#allocation4 + $0x820] sm:$0xff]
    %v945 = vld [vmem:[#allocation4 + $0x828] sm:$0xff]
    %v946 = vld [vmem:[#allocation4 + $0x830] sm:$0xff]
    %v947 = vld [vmem:[#allocation4 + $0x838] sm:$0xff]
    %v948 = vld [vmem:[#allocation4 + $0x840] sm:$0xff]
    %v949 = vld [vmem:[#allocation4 + $0x848] sm:$0xff]
    %v950 = vld [vmem:[#allocation4 + $0x850] sm:$0xff]
    %v951 = vld [vmem:[#allocation4 + $0x858] sm:$0xff]
    %v952 = vld [vmem:[#allocation4 + $0x860] sm:$0xff]
    %v953 = vld [vmem:[#allocation4 + $0x868] sm:$0xff]
    %v954 = vld [vmem:[#allocation4 + $0x870] sm:$0xff]
    %v955 = vld [vmem:[#allocation4 + $0x878] sm:$0xff]
    %v956 = vld [vmem:[#allocation4 + $0x880] sm:$0xff]
    %v957 = vld [vmem:[#allocation4 + $0x888] sm:$0xff]
    %v958 = vld [vmem:[#allocation4 + $0x890] sm:$0xff]
    %v959 = vld [vmem:[#allocation4 + $0x898] sm:$0xff]
    %v960 = vld [vmem:[#allocation4 + $0x8a0] sm:$0xff]
    %v961 = vld [vmem:[#allocation4 + $0x8a8] sm:$0xff]
    %v962 = vld [vmem:[#allocation4 + $0x8b0] sm:$0xff]
    %v963 = vld [vmem:[#allocation4 + $0x8b8] sm:$0xff]
    %v964 = vld [vmem:[#allocation4 + $0x8c0] sm:$0xff]
    %v965 = vld [vmem:[#allocation4 + $0x8c8] sm:$0xff]
    %v966 = vld [vmem:[#allocation4 + $0x8d0] sm:$0xff]
    %v967 = vld [vmem:[#allocation4 + $0x8d8] sm:$0xff]
    %v968 = vld [vmem:[#allocation4 + $0x8e0] sm:$0xff]
    %v969 = vld [vmem:[#allocation4 + $0x8e8] sm:$0xff]
    %v970 = vld [vmem:[#allocation4 + $0x8f0] sm:$0xff]
    %v971 = vld [vmem:[#allocation4 + $0x8f8] sm:$0xff]
    %v972 = vld [vmem:[#allocation4 + $0x900] sm:$0xff]
    %v973 = vld [vmem:[#allocation4 + $0x908] sm:$0xff]
    %v974 = vld [vmem:[#allocation4 + $0x910] sm:$0xff]
    %v975 = vld [vmem:[#allocation4 + $0x918] sm:$0xff]
    %v976 = vld [vmem:[#allocation4 + $0x920] sm:$0xff]
    %v977 = vld [vmem:[#allocation4 + $0x928] sm:$0xff]
    %v978 = vld [vmem:[#allocation4 + $0x930] sm:$0xff]
    %v979 = vld [vmem:[#allocation4 + $0x938] sm:$0xff]
    %v980 = vld [vmem:[#allocation4 + $0x940] sm:$0xff]
    %v981 = vld [vmem:[#allocation4 + $0x948] sm:$0xff]
    %v982 = vld [vmem:[#allocation4 + $0x950] sm:$0xff]
    %v983 = vld [vmem:[#allocation4 + $0x958] sm:$0xff]
    %v984 = vld [vmem:[#allocation4 + $0x960] sm:$0xff]
    %v985 = vld [vmem:[#allocation4 + $0x968] sm:$0xff]
    %v986 = vld [vmem:[#allocation4 + $0x970] sm:$0xff]
    %v987 = vld [vmem:[#allocation4 + $0x978] sm:$0xff]
    %v988 = vld [vmem:[#allocation4 + $0x980] sm:$0xff]
    %v989 = vld [vmem:[#allocation4 + $0x988] sm:$0xff]
    %v990 = vld [vmem:[#allocation4 + $0x990] sm:$0xff]
    %v991 = vld [vmem:[#allocation4 + $0x998] sm:$0xff]
    %v992 = vld [vmem:[#allocation4 + $0x9a0] sm:$0xff]
    %v993 = vld [vmem:[#allocation4 + $0x9a8] sm:$0xff]
    %v994 = vld [vmem:[#allocation4 + $0x9b0] sm:$0xff]
    %v995 = vld [vmem:[#allocation4 + $0x9b8] sm:$0xff]
    %v996 = vld [vmem:[#allocation4 + $0x9c0] sm:$0xff]
    %v997 = vld [vmem:[#allocation4 + $0x9c8] sm:$0xff]
    %v998 = vld [vmem:[#allocation4 + $0x9d0] sm:$0xff]
    %v999 = vld [vmem:[#allocation4 + $0x9d8] sm:$0xff]
    %v1000 = vld [vmem:[#allocation4 + $0x9e0] sm:$0xff]
    %v1001 = vld [vmem:[#allocation4 + $0x9e8] sm:$0xff]
    %v1002 = vld [vmem:[#allocation4 + $0x9f0] sm:$0xff]
    %v1003 = vld [vmem:[#allocation4 + $0x9f8] sm:$0xff]
    %v1004 = vld [vmem:[#allocation4 + $0xa00] sm:$0xff]
    %v1005 = vld [vmem:[#allocation4 + $0xa08] sm:$0xff]
    %v1006 = vld [vmem:[#allocation4 + $0xa10] sm:$0xff]
    %v1007 = vld [vmem:[#allocation4 + $0xa18] sm:$0xff]
    %v1008 = vld [vmem:[#allocation4 + $0xa20] sm:$0xff]
    %v1009 = vld [vmem:[#allocation4 + $0xa28] sm:$0xff]
    %v1010 = vld [vmem:[#allocation4 + $0xa30] sm:$0xff]
    %v1011 = vld [vmem:[#allocation4 + $0xa38] sm:$0xff]
    %v1012 = vld [vmem:[#allocation4 + $0xa40] sm:$0xff]
    %v1013 = vld [vmem:[#allocation4 + $0xa48] sm:$0xff]
    %v1014 = vld [vmem:[#allocation4 + $0xa50] sm:$0xff]
    %v1015 = vld [vmem:[#allocation4 + $0xa58] sm:$0xff]
    %v1016 = vld [vmem:[#allocation4 + $0xa60] sm:$0xff]
    %v1017 = vld [vmem:[#allocation4 + $0xa68] sm:$0xff]
    %v1018 = vld [vmem:[#allocation4 + $0xa70] sm:$0xff]
    %v1019 = vld [vmem:[#allocation4 + $0xa78] sm:$0xff]
    %v1020 = vld [vmem:[#allocation4 + $0xa80] sm:$0xff]
    %v1021 = vld [vmem:[#allocation4 + $0xa88] sm:$0xff]
    %v1022 = vld [vmem:[#allocation4 + $0xa90] sm:$0xff]
    %v1023 = vld [vmem:[#allocation4 + $0xa98] sm:$0xff]
    %v1024 = vld [vmem:[#allocation4 + $0xaa0] sm:$0xff]
    %v1025 = vld [vmem:[#allocation4 + $0xaa8] sm:$0xff]
    %v1026 = vld [vmem:[#allocation4 + $0xab0] sm:$0xff]
    %v1027 = vld [vmem:[#allocation4 + $0xab8] sm:$0xff]
    %v1028 = vld [vmem:[#allocation4 + $0xac0] sm:$0xff]
    %v1029 = vld [vmem:[#allocation4 + $0xac8] sm:$0xff]
    %v1030 = vld [vmem:[#allocation4 + $0xad0] sm:$0xff]
    %v1031 = vld [vmem:[#allocation4 + $0xad8] sm:$0xff]
    %v1032 = vld [vmem:[#allocation4 + $0xae0] sm:$0xff]
    %v1033 = vld [vmem:[#allocation4 + $0xae8] sm:$0xff]
    %v1034 = vld [vmem:[#allocation4 + $0xaf0] sm:$0xff]
    %v1035 = vld [vmem:[#allocation4 + $0xaf8] sm:$0xff]
    %v1036 = vld [vmem:[#allocation4 + $0xb00] sm:$0xff]
    %v1037 = vld [vmem:[#allocation4 + $0xb08] sm:$0xff]
    %v1038 = vld [vmem:[#allocation4 + $0xb10] sm:$0xff]
    %v1039 = vld [vmem:[#allocation4 + $0xb18] sm:$0xff]
    %v1040 = vld [vmem:[#allocation4 + $0xb20] sm:$0xff]
    %v1041 = vld [vmem:[#allocation4 + $0xb28] sm:$0xff]
    %v1042 = vld [vmem:[#allocation4 + $0xb30] sm:$0xff]
    %v1043 = vld [vmem:[#allocation4 + $0xb38] sm:$0xff]
    %v1044 = vld [vmem:[#allocation4 + $0xb40] sm:$0xff]
    %v1045 = vld [vmem:[#allocation4 + $0xb48] sm:$0xff]
    %v1046 = vld [vmem:[#allocation4 + $0xb50] sm:$0xff]
    %v1047 = vld [vmem:[#allocation4 + $0xb58] sm:$0xff]
    %v1048 = vld [vmem:[#allocation4 + $0xb60] sm:$0xff]
    %v1049 = vld [vmem:[#allocation4 + $0xb68] sm:$0xff]
    %v1050 = vld [vmem:[#allocation4 + $0xb70] sm:$0xff]
    %v1051 = vld [vmem:[#allocation4 + $0xb78] sm:$0xff]
    %v1052 = vld [vmem:[#allocation4 + $0xb80] sm:$0xff]
    %v1053 = vld [vmem:[#allocation4 + $0xb88] sm:$0xff]
    %v1054 = vld [vmem:[#allocation4 + $0xb90] sm:$0xff]
    %v1055 = vld [vmem:[#allocation4 + $0xb98] sm:$0xff]
    %v1056 = vld [vmem:[#allocation4 + $0xba0] sm:$0xff]
    %v1057 = vld [vmem:[#allocation4 + $0xba8] sm:$0xff]
    %v1058 = vld [vmem:[#allocation4 + $0xbb0] sm:$0xff]
    %v1059 = vld [vmem:[#allocation4 + $0xbb8] sm:$0xff]
    %v1060 = vld [vmem:[#allocation4 + $0xbc0] sm:$0xff]
    %v1061 = vld [vmem:[#allocation4 + $0xbc8] sm:$0xff]
    %v1062 = vld [vmem:[#allocation4 + $0xbd0] sm:$0xff]
    %v1063 = vld [vmem:[#allocation4 + $0xbd8] sm:$0xff]
    %v1064 = vld [vmem:[#allocation4 + $0xbe0] sm:$0xff]
    %v1065 = vld [vmem:[#allocation4 + $0xbe8] sm:$0xff]
    %v1066 = vld [vmem:[#allocation4 + $0xbf0] sm:$0xff]
    %v1067 = vld [vmem:[#allocation4 + $0xbf8] sm:$0xff]
    %v1068 = vld [vmem:[#allocation6] sm:$0x1]
    %v1070 = vperm.slane %v1068, 0
    %1072 = vmatpush.msra.mxu0 %v699
    %1073 = vmatpush.msra.mxu0 %v698
    %1074 = vmatpush.msra.mxu0 %v697
    %1075 = vmatpush.msra.mxu0 %v696
    %1076 = vmatpush.msra.mxu0 %v695
    %1077 = vmatpush.msra.mxu0 %v694
    %1078 = vmatpush.msra.mxu0 %v693
    %1079 = vmatpush.msra.mxu0 %v692
    %1080 = vmatpush.msra.mxu0 %v691
    %1081 = vmatpush.msra.mxu0 %v690
    %1082 = vmatpush.msra.mxu0 %v689
    %1083 = vmatpush.msra.mxu0 %v688
    %1084 = vmatpush.msra.mxu0 %v687
    %1085 = vmatpush.msra.mxu0 %v686
    %1086 = vmatpush.msra.mxu0 %v685
    %1087 = vmatpush.msra.mxu0 %v684
    %1088 = vmatmul.f32.gmra.mxu0 %v338
    %v1089 = vpop.f32.mrf.mxu0
    %v1090 = vadd.f32 %v1070, %v1089
    %1091 = vdwg.mxu0
    %1092 = vmatpush.msra.mxu0 %v715
    %1093 = vmatpush.msra.mxu0 %v714
    %1094 = vmatpush.msra.mxu0 %v713
    %1095 = vmatpush.msra.mxu0 %v712
    %1096 = vmatpush.msra.mxu0 %v711
    %1097 = vmatpush.msra.mxu0 %v710
    %1098 = vmatpush.msra.mxu0 %v709
    %1099 = vmatpush.msra.mxu0 %v708
    %1100 = vmatpush.msra.mxu0 %v707
    %1101 = vmatpush.msra.mxu0 %v706
    %1102 = vmatpush.msra.mxu0 %v705
    %1103 = vmatpush.msra.mxu0 %v704
    %1104 = vmatpush.msra.mxu0 %v703
    %1105 = vmatpush.msra.mxu0 %v702
    %1106 = vmatpush.msra.mxu0 %v701
    %1107 = vmatpush.msra.mxu0 %v700
    %1108 = vmatmul.f32.gmra.mxu0 %v353
    %v1109 = vpop.f32.mrf.mxu0
    %v1110 = vadd.f32 %v1090, %v1109
    %1111 = vdwg.mxu0
    %1112 = vmatpush.msra.mxu0 %v731
    %1113 = vmatpush.msra.mxu0 %v730
    %1114 = vmatpush.msra.mxu0 %v729
    %1115 = vmatpush.msra.mxu0 %v728
    %1116 = vmatpush.msra.mxu0 %v727
    %1117 = vmatpush.msra.mxu0 %v726
    %1118 = vmatpush.msra.mxu0 %v725
    %1119 = vmatpush.msra.mxu0 %v724
    %1120 = vmatpush.msra.mxu0 %v723
    %1121 = vmatpush.msra.mxu0 %v722
    %1122 = vmatpush.msra.mxu0 %v721
    %1123 = vmatpush.msra.mxu0 %v720
    %1124 = vmatpush.msra.mxu0 %v719
    %1125 = vmatpush.msra.mxu0 %v718
    %1126 = vmatpush.msra.mxu0 %v717
    %1127 = vmatpush.msra.mxu0 %v716
    %1128 = vmatmul.f32.gmra.mxu0 %v368
    %v1129 = vpop.f32.mrf.mxu0
    %v1130 = vadd.f32 %v1110, %v1129
    %1131 = vdwg.mxu0
    %1132 = vmatpush.msra.mxu0 %v747
    %1133 = vmatpush.msra.mxu0 %v746
    %1134 = vmatpush.msra.mxu0 %v745
    %1135 = vmatpush.msra.mxu0 %v744
    %1136 = vmatpush.msra.mxu0 %v743
    %1137 = vmatpush.msra.mxu0 %v742
    %1138 = vmatpush.msra.mxu0 %v741
    %1139 = vmatpush.msra.mxu0 %v740
    %1140 = vmatpush.msra.mxu0 %v739
    %1141 = vmatpush.msra.mxu0 %v738
    %1142 = vmatpush.msra.mxu0 %v737
    %1143 = vmatpush.msra.mxu0 %v736
    %1144 = vmatpush.msra.mxu0 %v735
    %1145 = vmatpush.msra.mxu0 %v734
    %1146 = vmatpush.msra.mxu0 %v733
    %1147 = vmatpush.msra.mxu0 %v732
    %1148 = vmatmul.f32.gmra.mxu0 %v383
    %v1149 = vpop.f32.mrf.mxu0
    %v1150 = vadd.f32 %v1130, %v1149
    %1151 = vdwg.mxu0
    %1152 = vmatpush.msra.mxu0 %v763
    %1153 = vmatpush.msra.mxu0 %v762
    %1154 = vmatpush.msra.mxu0 %v761
    %1155 = vmatpush.msra.mxu0 %v760
    %1156 = vmatpush.msra.mxu0 %v759
    %1157 = vmatpush.msra.mxu0 %v758
    %1158 = vmatpush.msra.mxu0 %v757
    %1159 = vmatpush.msra.mxu0 %v756
    %1160 = vmatpush.msra.mxu0 %v755
    %1161 = vmatpush.msra.mxu0 %v754
    %1162 = vmatpush.msra.mxu0 %v753
    %1163 = vmatpush.msra.mxu0 %v752
    %1164 = vmatpush.msra.mxu0 %v751
    %1165 = vmatpush.msra.mxu0 %v750
    %1166 = vmatpush.msra.mxu0 %v749
    %1167 = vmatpush.msra.mxu0 %v748
    %1168 = vmatmul.f32.gmra.mxu0 %v398
    %v1169 = vpop.f32.mrf.mxu0
    %v1170 = vadd.f32 %v1150, %v1169
    %1171 = vdwg.mxu0
    %1172 = vmatpush.msra.mxu0 %v779
    %1173 = vmatpush.msra.mxu0 %v778
    %1174 = vmatpush.msra.mxu0 %v777
    %1175 = vmatpush.msra.mxu0 %v776
    %1176 = vmatpush.msra.mxu0 %v775
    %1177 = vmatpush.msra.mxu0 %v774
    %1178 = vmatpush.msra.mxu0 %v773
    %1179 = vmatpush.msra.mxu0 %v772
    %1180 = vmatpush.msra.mxu0 %v771
    %1181 = vmatpush.msra.mxu0 %v770
    %1182 = vmatpush.msra.mxu0 %v769
    %1183 = vmatpush.msra.mxu0 %v768
    %1184 = vmatpush.msra.mxu0 %v767
    %1185 = vmatpush.msra.mxu0 %v766
    %1186 = vmatpush.msra.mxu0 %v765
    %1187 = vmatpush.msra.mxu0 %v764
    %1188 = vmatmul.f32.gmra.mxu0 %v413
    %v1189 = vpop.f32.mrf.mxu0
    %v1190 = vadd.f32 %v1170, %v1189
    %1191 = vdwg.mxu0
    %1192 = vmatpush.msra.mxu0 %v795
    %1193 = vmatpush.msra.mxu0 %v794
    %1194 = vmatpush.msra.mxu0 %v793
    %1195 = vmatpush.msra.mxu0 %v792
    %1196 = vmatpush.msra.mxu0 %v791
    %1197 = vmatpush.msra.mxu0 %v790
    %1198 = vmatpush.msra.mxu0 %v789
    %1199 = vmatpush.msra.mxu0 %v788
    %1200 = vmatpush.msra.mxu0 %v787
    %1201 = vmatpush.msra.mxu0 %v786
    %1202 = vmatpush.msra.mxu0 %v785
    %1203 = vmatpush.msra.mxu0 %v784
    %1204 = vmatpush.msra.mxu0 %v783
    %1205 = vmatpush.msra.mxu0 %v782
    %1206 = vmatpush.msra.mxu0 %v781
    %1207 = vmatpush.msra.mxu0 %v780
    %1208 = vmatmul.f32.gmra.mxu0 %v428
    %v1209 = vpop.f32.mrf.mxu0
    %v1210 = vadd.f32 %v1190, %v1209
    %1211 = vdwg.mxu0
    %1212 = vmatpush.msra.mxu0 %v811
    %1213 = vmatpush.msra.mxu0 %v810
    %1214 = vmatpush.msra.mxu0 %v809
    %1215 = vmatpush.msra.mxu0 %v808
    %1216 = vmatpush.msra.mxu0 %v807
    %1217 = vmatpush.msra.mxu0 %v806
    %1218 = vmatpush.msra.mxu0 %v805
    %1219 = vmatpush.msra.mxu0 %v804
    %1220 = vmatpush.msra.mxu0 %v803
    %1221 = vmatpush.msra.mxu0 %v802
    %1222 = vmatpush.msra.mxu0 %v801
    %1223 = vmatpush.msra.mxu0 %v800
    %1224 = vmatpush.msra.mxu0 %v799
    %1225 = vmatpush.msra.mxu0 %v798
    %1226 = vmatpush.msra.mxu0 %v797
    %1227 = vmatpush.msra.mxu0 %v796
    %1228 = vmatmul.f32.gmra.mxu0 %v443
    %v1229 = vpop.f32.mrf.mxu0
    %v1230 = vadd.f32 %v1210, %v1229
    %1231 = vdwg.mxu0
    %1232 = vmatpush.msra.mxu0 %v827
    %1233 = vmatpush.msra.mxu0 %v826
    %1234 = vmatpush.msra.mxu0 %v825
    %1235 = vmatpush.msra.mxu0 %v824
    %1236 = vmatpush.msra.mxu0 %v823
    %1237 = vmatpush.msra.mxu0 %v822
    %1238 = vmatpush.msra.mxu0 %v821
    %1239 = vmatpush.msra.mxu0 %v820
    %1240 = vmatpush.msra.mxu0 %v819
    %1241 = vmatpush.msra.mxu0 %v818
    %1242 = vmatpush.msra.mxu0 %v817
    %1243 = vmatpush.msra.mxu0 %v816
    %1244 = vmatpush.msra.mxu0 %v815
    %1245 = vmatpush.msra.mxu0 %v814
    %1246 = vmatpush.msra.mxu0 %v813
    %1247 = vmatpush.msra.mxu0 %v812
    %1248 = vmatmul.f32.gmra.mxu0 %v458
    %v1249 = vpop.f32.mrf.mxu0
    %v1250 = vadd.f32 %v1230, %v1249
    %1251 = vdwg.mxu0
    %1252 = vmatpush.msra.mxu0 %v843
    %1253 = vmatpush.msra.mxu0 %v842
    %1254 = vmatpush.msra.mxu0 %v841
    %1255 = vmatpush.msra.mxu0 %v840
    %1256 = vmatpush.msra.mxu0 %v839
    %1257 = vmatpush.msra.mxu0 %v838
    %1258 = vmatpush.msra.mxu0 %v837
    %1259 = vmatpush.msra.mxu0 %v836
    %1260 = vmatpush.msra.mxu0 %v835
    %1261 = vmatpush.msra.mxu0 %v834
    %1262 = vmatpush.msra.mxu0 %v833
    %1263 = vmatpush.msra.mxu0 %v832
    %1264 = vmatpush.msra.mxu0 %v831
    %1265 = vmatpush.msra.mxu0 %v830
    %1266 = vmatpush.msra.mxu0 %v829
    %1267 = vmatpush.msra.mxu0 %v828
    %1268 = vmatmul.f32.gmra.mxu0 %v473
    %v1269 = vpop.f32.mrf.mxu0
    %v1270 = vadd.f32 %v1250, %v1269
    %1271 = vdwg.mxu0
    %1272 = vmatpush.msra.mxu0 %v859
    %1273 = vmatpush.msra.mxu0 %v858
    %1274 = vmatpush.msra.mxu0 %v857
    %1275 = vmatpush.msra.mxu0 %v856
    %1276 = vmatpush.msra.mxu0 %v855
    %1277 = vmatpush.msra.mxu0 %v854
    %1278 = vmatpush.msra.mxu0 %v853
    %1279 = vmatpush.msra.mxu0 %v852
    %1280 = vmatpush.msra.mxu0 %v851
    %1281 = vmatpush.msra.mxu0 %v850
    %1282 = vmatpush.msra.mxu0 %v849
    %1283 = vmatpush.msra.mxu0 %v848
    %1284 = vmatpush.msra.mxu0 %v847
    %1285 = vmatpush.msra.mxu0 %v846
    %1286 = vmatpush.msra.mxu0 %v845
    %1287 = vmatpush.msra.mxu0 %v844
    %1288 = vmatmul.f32.gmra.mxu0 %v488
    %v1289 = vpop.f32.mrf.mxu0
    %v1290 = vadd.f32 %v1270, %v1289
    %1291 = vdwg.mxu0
    %1292 = vmatpush.msra.mxu0 %v875
    %1293 = vmatpush.msra.mxu0 %v874
    %1294 = vmatpush.msra.mxu0 %v873
    %1295 = vmatpush.msra.mxu0 %v872
    %1296 = vmatpush.msra.mxu0 %v871
    %1297 = vmatpush.msra.mxu0 %v870
    %1298 = vmatpush.msra.mxu0 %v869
    %1299 = vmatpush.msra.mxu0 %v868
    %1300 = vmatpush.msra.mxu0 %v867
    %1301 = vmatpush.msra.mxu0 %v866
    %1302 = vmatpush.msra.mxu0 %v865
    %1303 = vmatpush.msra.mxu0 %v864
    %1304 = vmatpush.msra.mxu0 %v863
    %1305 = vmatpush.msra.mxu0 %v862
    %1306 = vmatpush.msra.mxu0 %v861
    %1307 = vmatpush.msra.mxu0 %v860
    %1308 = vmatmul.f32.gmra.mxu0 %v503
    %v1309 = vpop.f32.mrf.mxu0
    %v1310 = vadd.f32 %v1290, %v1309
    %1311 = vdwg.mxu0
    %1312 = vmatpush.msra.mxu0 %v891
    %1313 = vmatpush.msra.mxu0 %v890
    %1314 = vmatpush.msra.mxu0 %v889
    %1315 = vmatpush.msra.mxu0 %v888
    %1316 = vmatpush.msra.mxu0 %v887
    %1317 = vmatpush.msra.mxu0 %v886
    %1318 = vmatpush.msra.mxu0 %v885
    %1319 = vmatpush.msra.mxu0 %v884
    %1320 = vmatpush.msra.mxu0 %v883
    %1321 = vmatpush.msra.mxu0 %v882
    %1322 = vmatpush.msra.mxu0 %v881
    %1323 = vmatpush.msra.mxu0 %v880
    %1324 = vmatpush.msra.mxu0 %v879
    %1325 = vmatpush.msra.mxu0 %v878
    %1326 = vmatpush.msra.mxu0 %v877
    %1327 = vmatpush.msra.mxu0 %v876
    %1328 = vmatmul.f32.gmra.mxu0 %v518
    %v1329 = vpop.f32.mrf.mxu0
    %v1330 = vadd.f32 %v1310, %v1329
    %1331 = vdwg.mxu0
    %1332 = vmatpush.msra.mxu0 %v907
    %1333 = vmatpush.msra.mxu0 %v906
    %1334 = vmatpush.msra.mxu0 %v905
    %1335 = vmatpush.msra.mxu0 %v904
    %1336 = vmatpush.msra.mxu0 %v903
    %1337 = vmatpush.msra.mxu0 %v902
    %1338 = vmatpush.msra.mxu0 %v901
    %1339 = vmatpush.msra.mxu0 %v900
    %1340 = vmatpush.msra.mxu0 %v899
    %1341 = vmatpush.msra.mxu0 %v898
    %1342 = vmatpush.msra.mxu0 %v897
    %1343 = vmatpush.msra.mxu0 %v896
    %1344 = vmatpush.msra.mxu0 %v895
    %1345 = vmatpush.msra.mxu0 %v894
    %1346 = vmatpush.msra.mxu0 %v893
    %1347 = vmatpush.msra.mxu0 %v892
    %1348 = vmatmul.f32.gmra.mxu0 %v533
    %v1349 = vpop.f32.mrf.mxu0
    %v1350 = vadd.f32 %v1330, %v1349
    %1351 = vdwg.mxu0
    %1352 = vmatpush.msra.mxu0 %v923
    %1353 = vmatpush.msra.mxu0 %v922
    %1354 = vmatpush.msra.mxu0 %v921
    %1355 = vmatpush.msra.mxu0 %v920
    %1356 = vmatpush.msra.mxu0 %v919
    %1357 = vmatpush.msra.mxu0 %v918
    %1358 = vmatpush.msra.mxu0 %v917
    %1359 = vmatpush.msra.mxu0 %v916
    %1360 = vmatpush.msra.mxu0 %v915
    %1361 = vmatpush.msra.mxu0 %v914
    %1362 = vmatpush.msra.mxu0 %v913
    %1363 = vmatpush.msra.mxu0 %v912
    %1364 = vmatpush.msra.mxu0 %v911
    %1365 = vmatpush.msra.mxu0 %v910
    %1366 = vmatpush.msra.mxu0 %v909
    %1367 = vmatpush.msra.mxu0 %v908
    %1368 = vmatmul.f32.gmra.mxu0 %v548
    %v1369 = vpop.f32.mrf.mxu0
    %v1370 = vadd.f32 %v1350, %v1369
    %1371 = vdwg.mxu0
    %1372 = vmatpush.msra.mxu0 %v939
    %1373 = vmatpush.msra.mxu0 %v938
    %1374 = vmatpush.msra.mxu0 %v937
    %1375 = vmatpush.msra.mxu0 %v936
    %1376 = vmatpush.msra.mxu0 %v935
    %1377 = vmatpush.msra.mxu0 %v934
    %1378 = vmatpush.msra.mxu0 %v933
    %1379 = vmatpush.msra.mxu0 %v932
    %1380 = vmatpush.msra.mxu0 %v931
    %1381 = vmatpush.msra.mxu0 %v930
    %1382 = vmatpush.msra.mxu0 %v929
    %1383 = vmatpush.msra.mxu0 %v928
    %1384 = vmatpush.msra.mxu0 %v927
    %1385 = vmatpush.msra.mxu0 %v926
    %1386 = vmatpush.msra.mxu0 %v925
    %1387 = vmatpush.msra.mxu0 %v924
    %1388 = vmatmul.f32.gmra.mxu0 %v563
    %v1389 = vpop.f32.mrf.mxu0
    %v1390 = vadd.f32 %v1370, %v1389
    %1391 = vdwg.mxu0
    %1392 = vmatpush.msra.mxu0 %v955
    %1393 = vmatpush.msra.mxu0 %v954
    %1394 = vmatpush.msra.mxu0 %v953
    %1395 = vmatpush.msra.mxu0 %v952
    %1396 = vmatpush.msra.mxu0 %v951
    %1397 = vmatpush.msra.mxu0 %v950
    %1398 = vmatpush.msra.mxu0 %v949
    %1399 = vmatpush.msra.mxu0 %v948
    %1400 = vmatpush.msra.mxu0 %v947
    %1401 = vmatpush.msra.mxu0 %v946
    %1402 = vmatpush.msra.mxu0 %v945
    %1403 = vmatpush.msra.mxu0 %v944
    %1404 = vmatpush.msra.mxu0 %v943
    %1405 = vmatpush.msra.mxu0 %v942
    %1406 = vmatpush.msra.mxu0 %v941
    %1407 = vmatpush.msra.mxu0 %v940
    %1408 = vmatmul.f32.gmra.mxu0 %v578
    %v1409 = vpop.f32.mrf.mxu0
    %v1410 = vadd.f32 %v1390, %v1409
    %1411 = vdwg.mxu0
    %1412 = vmatpush.msra.mxu0 %v971
    %1413 = vmatpush.msra.mxu0 %v970
    %1414 = vmatpush.msra.mxu0 %v969
    %1415 = vmatpush.msra.mxu0 %v968
    %1416 = vmatpush.msra.mxu0 %v967
    %1417 = vmatpush.msra.mxu0 %v966
    %1418 = vmatpush.msra.mxu0 %v965
    %1419 = vmatpush.msra.mxu0 %v964
    %1420 = vmatpush.msra.mxu0 %v963
    %1421 = vmatpush.msra.mxu0 %v962
    %1422 = vmatpush.msra.mxu0 %v961
    %1423 = vmatpush.msra.mxu0 %v960
    %1424 = vmatpush.msra.mxu0 %v959
    %1425 = vmatpush.msra.mxu0 %v958
    %1426 = vmatpush.msra.mxu0 %v957
    %1427 = vmatpush.msra.mxu0 %v956
    %1428 = vmatmul.f32.gmra.mxu0 %v593
    %v1429 = vpop.f32.mrf.mxu0
    %v1430 = vadd.f32 %v1410, %v1429
    %1431 = vdwg.mxu0
    %1432 = vmatpush.msra.mxu0 %v987
    %1433 = vmatpush.msra.mxu0 %v986
    %1434 = vmatpush.msra.mxu0 %v985
    %1435 = vmatpush.msra.mxu0 %v984
    %1436 = vmatpush.msra.mxu0 %v983
    %1437 = vmatpush.msra.mxu0 %v982
    %1438 = vmatpush.msra.mxu0 %v981
    %1439 = vmatpush.msra.mxu0 %v980
    %1440 = vmatpush.msra.mxu0 %v979
    %1441 = vmatpush.msra.mxu0 %v978
    %1442 = vmatpush.msra.mxu0 %v977
    %1443 = vmatpush.msra.mxu0 %v976
    %1444 = vmatpush.msra.mxu0 %v975
    %1445 = vmatpush.msra.mxu0 %v974
    %1446 = vmatpush.msra.mxu0 %v973
    %1447 = vmatpush.msra.mxu0 %v972
    %1448 = vmatmul.f32.gmra.mxu0 %v608
    %v1449 = vpop.f32.mrf.mxu0
    %v1450 = vadd.f32 %v1430, %v1449
    %1451 = vdwg.mxu0
    %1452 = vmatpush.msra.mxu0 %v1003
    %1453 = vmatpush.msra.mxu0 %v1002
    %1454 = vmatpush.msra.mxu0 %v1001
    %1455 = vmatpush.msra.mxu0 %v1000
    %1456 = vmatpush.msra.mxu0 %v999
    %1457 = vmatpush.msra.mxu0 %v998
    %1458 = vmatpush.msra.mxu0 %v997
    %1459 = vmatpush.msra.mxu0 %v996
    %1460 = vmatpush.msra.mxu0 %v995
    %1461 = vmatpush.msra.mxu0 %v994
    %1462 = vmatpush.msra.mxu0 %v993
    %1463 = vmatpush.msra.mxu0 %v992
    %1464 = vmatpush.msra.mxu0 %v991
    %1465 = vmatpush.msra.mxu0 %v990
    %1466 = vmatpush.msra.mxu0 %v989
    %1467 = vmatpush.msra.mxu0 %v988
    %1468 = vmatmul.f32.gmra.mxu0 %v623
    %v1469 = vpop.f32.mrf.mxu0
    %v1470 = vadd.f32 %v1450, %v1469
    %1471 = vdwg.mxu0
    %1472 = vmatpush.msra.mxu0 %v1019
    %1473 = vmatpush.msra.mxu0 %v1018
    %1474 = vmatpush.msra.mxu0 %v1017
    %1475 = vmatpush.msra.mxu0 %v1016
    %1476 = vmatpush.msra.mxu0 %v1015
    %1477 = vmatpush.msra.mxu0 %v1014
    %1478 = vmatpush.msra.mxu0 %v1013
    %1479 = vmatpush.msra.mxu0 %v1012
    %1480 = vmatpush.msra.mxu0 %v1011
    %1481 = vmatpush.msra.mxu0 %v1010
    %1482 = vmatpush.msra.mxu0 %v1009
    %1483 = vmatpush.msra.mxu0 %v1008
    %1484 = vmatpush.msra.mxu0 %v1007
    %1485 = vmatpush.msra.mxu0 %v1006
    %1486 = vmatpush.msra.mxu0 %v1005
    %1487 = vmatpush.msra.mxu0 %v1004
    %1488 = vmatmul.f32.gmra.mxu0 %v638
    %v1489 = vpop.f32.mrf.mxu0
    %v1490 = vadd.f32 %v1470, %v1489
    %1491 = vdwg.mxu0
    %1492 = vmatpush.msra.mxu0 %v1035
    %1493 = vmatpush.msra.mxu0 %v1034
    %1494 = vmatpush.msra.mxu0 %v1033
    %1495 = vmatpush.msra.mxu0 %v1032
    %1496 = vmatpush.msra.mxu0 %v1031
    %1497 = vmatpush.msra.mxu0 %v1030
    %1498 = vmatpush.msra.mxu0 %v1029
    %1499 = vmatpush.msra.mxu0 %v1028
    %1500 = vmatpush.msra.mxu0 %v1027
    %1501 = vmatpush.msra.mxu0 %v1026
    %1502 = vmatpush.msra.mxu0 %v1025
    %1503 = vmatpush.msra.mxu0 %v1024
    %1504 = vmatpush.msra.mxu0 %v1023
    %1505 = vmatpush.msra.mxu0 %v1022
    %1506 = vmatpush.msra.mxu0 %v1021
    %1507 = vmatpush.msra.mxu0 %v1020
    %1508 = vmatmul.f32.gmra.mxu0 %v653
    %v1509 = vpop.f32.mrf.mxu0
    %v1510 = vadd.f32 %v1490, %v1509
    %1511 = vdwg.mxu0
    %1512 = vmatpush.msra.mxu0 %v1051
    %1513 = vmatpush.msra.mxu0 %v1050
    %1514 = vmatpush.msra.mxu0 %v1049
    %1515 = vmatpush.msra.mxu0 %v1048
    %1516 = vmatpush.msra.mxu0 %v1047
    %1517 = vmatpush.msra.mxu0 %v1046
    %1518 = vmatpush.msra.mxu0 %v1045
    %1519 = vmatpush.msra.mxu0 %v1044
    %1520 = vmatpush.msra.mxu0 %v1043
    %1521 = vmatpush.msra.mxu0 %v1042
    %1522 = vmatpush.msra.mxu0 %v1041
    %1523 = vmatpush.msra.mxu0 %v1040
    %1524 = vmatpush.msra.mxu0 %v1039
    %1525 = vmatpush.msra.mxu0 %v1038
    %1526 = vmatpush.msra.mxu0 %v1037
    %1527 = vmatpush.msra.mxu0 %v1036
    %1528 = vmatmul.f32.gmra.mxu0 %v668
    %v1529 = vpop.f32.mrf.mxu0
    %v1530 = vadd.f32 %v1510, %v1529
    %1531 = vdwg.mxu0
    %1532 = vmatpush.msra.mxu0 %v1067
    %1533 = vmatpush.msra.mxu0 %v1066
    %1534 = vmatpush.msra.mxu0 %v1065
    %1535 = vmatpush.msra.mxu0 %v1064
    %1536 = vmatpush.msra.mxu0 %v1063
    %1537 = vmatpush.msra.mxu0 %v1062
    %1538 = vmatpush.msra.mxu0 %v1061
    %1539 = vmatpush.msra.mxu0 %v1060
    %1540 = vmatpush.msra.mxu0 %v1059
    %1541 = vmatpush.msra.mxu0 %v1058
    %1542 = vmatpush.msra.mxu0 %v1057
    %1543 = vmatpush.msra.mxu0 %v1056
    %1544 = vmatpush.msra.mxu0 %v1055
    %1545 = vmatpush.msra.mxu0 %v1054
    %1546 = vmatpush.msra.mxu0 %v1053
    %1547 = vmatpush.msra.mxu0 %v1052
    %1548 = vmatmul.f32.gmra.mxu0 %v683
    %v1549 = vpop.f32.mrf.mxu0
    %v1550 = vadd.f32 %v1530, %v1549
    %1551 = vdwg.mxu0
    %1553 = vrot.lane.b32.xlu0 %v1550, 127
    %v1554 = vpop.permute.xlu0 %1553
    %v1556 = vmax.f32 %v1550, %v1554
    %v1557 = vsub.f32 %v1550, %v1556
    %v1558 = vmul.f32 %v1557, 1.442695
    %v1559 = vpow.pop %v1558
    %1561 = vrot.lane.b32.xlu0 %v1556, 1
    %v1562 = vpop.permute.xlu0 %1561
    %v1564 = vsub.f32 %v1550, %v1562
    %v1565 = vmul.f32 %v1564, 1.442695
    %v1566 = vpow.pop %v1565
    %1568 = vrot.lane.b32.xlu0 %v1566, 127
    %v1569 = vpop.permute.xlu0 %1568
    %v1571 = vadd.f32 %v1559, %v1569
    %v1572 = vlog2.pop %v1571
    %v1573 = vmul.f32 %v1572, 0.6931472
    %v1574 = vadd.f32 %v1556, %v1573
    %1576 = vset.pattern.permute.xlu0 0
    %1577 = vperm.xlu0 %1576, %v1574
    %v1578 = vpop.permute.xlu0 %1577
    %v1580 = vsub.f32 %v1550, %v1578
    %1581 = vst [vmem:[%s4] sm:$0xff] %v1580
    // Predicated region
    $region30: #{imdb_forward.1} parent=1 // pred_check
      _
    $region31: #{imdb_forward.1} parent=1 // pred_check_branch
      %1583 = sbr.rel (0) target = $region33
    $region32: #{imdb_forward.1} parent=1 // pred_region
      _
    $region33: #{imdb_forward.1} parent=1 // pred_fallthru
      _
    // Predicated region
    $region34: #{imdb_forward.1} parent=1 // pred_check
      _
    $region35: #{imdb_forward.1} parent=1 // pred_check_branch
      %1585 = sbr.rel (0) target = $region37
    $region36: #{imdb_forward.1} parent=1 // pred_region
      _
    $region37: #{imdb_forward.1} parent=1 // pred_fallthru
      _
    %1586 = vsyncpa [#allocation3], 1
    %1587 = vsyncpa [#allocation5], 1

</llo_original>
